<compile_context>
chip_gen: v7x
topology: tpu7x:2x2x1
jax: 0.10.0
libtpu: 0.0.40
codegen_flags: <defaults>
</compile_context>

<pallas_src>
import jax
import jax.numpy as jnp
import numpy as np
from jax.experimental import pallas as pl
from jax.experimental.pallas import tpu as pltpu

# Small problem sizes consistent with the module's forward.
N, H, W = 2, 16, 16
C_IN, C_OUT = 4, 8
NEG_SLOPE = 0.1
EPS = 1e-5

ROWS = N * H          # 32  rows fed to the MXU (sublane-major)
LANES = W * C_OUT     # 128 -> exactly one lane tile (lane-dense)
PIX = N * H * W       # 512 elements per channel for BN statistics


def _lrelu(x):
    return jnp.where(x > 0, x, NEG_SLOPE * x)


def resblock_kernel(xin_ref,    # (N, H+2, W*C_IN)   input, H-padded, width*chan packed
                    w1_ref,     # (3, W*C_IN, W*C_OUT)   banded conv1 weights per dy
                    w2_ref,     # (3, W*C_OUT, W*C_OUT)  banded conv2 weights per dy
                    wsc_ref,    # (W*C_IN, W*C_OUT)      block-diag 1x1 shortcut weights
                    vec_ref,    # (5, W*C_OUT): [g1, be1, g2, be2, bsc], lane-packed
                    out_ref,    # (N*H, W*C_OUT)
                    hpad_ref):  # scratch (N, H+2, W*C_OUT) for H-padding of h1
    f32 = jnp.float32
    inv_n = 1.0 / PIX

    # Q[j, k] = 1 iff packed lanes j and k carry the same channel (j % C_OUT == k % C_OUT).
    # Used to sum per-channel statistics across the W groups of lanes and broadcast them
    # back, as one small MXU matmul (C_OUT is a power of two -> bitwise AND).
    rj = jax.lax.broadcasted_iota(jnp.int32, (LANES, LANES), 0)
    ck = jax.lax.broadcasted_iota(jnp.int32, (LANES, LANES), 1)
    q = ((rj & (C_OUT - 1)) == (ck & (C_OUT - 1))).astype(f32)

    def bn_train(acc, gamma, beta):
        # Training-mode BatchNorm: batch mean / biased variance over (N, H, W).
        rowsum = jnp.sum(acc, axis=0, keepdims=True)                       # (1, LANES)
        mean = jnp.dot(rowsum, q, preferred_element_type=f32) * inv_n      # per-channel, lane-broadcast
        d = acc - mean
        sqsum = jnp.sum(d * d, axis=0, keepdims=True)
        var = jnp.dot(sqsum, q, preferred_element_type=f32) * inv_n
        scale = gamma * jax.lax.rsqrt(var + EPS)
        return d * scale + beta                                            # single FMA normalize

    # ---- conv1: 3x3, pad=1.  Width taps + width zero-padding are folded into the
    #      banded weights; height padding comes from the pre-padded rows of xin. ------
    acc1 = jnp.zeros((ROWS, LANES), f32)
    for dy in range(3):
        slab = xin_ref[:, dy:dy + H, :].reshape(ROWS, W * C_IN)            # (32, 64)
        acc1 = acc1 + jnp.dot(slab, w1_ref[dy], preferred_element_type=f32)
    # conv bias omitted: it cancels exactly against the BN mean subtraction.
    h1 = _lrelu(bn_train(acc1, vec_ref[0:1, :], vec_ref[1:2, :]))          # (32, 128)

    # ---- height-pad h1 through a small lane-dense scratch (border rows only) --------
    zrow = jnp.zeros((N, 1, LANES), f32)
    hpad_ref[:, 0:1, :] = zrow
    hpad_ref[:, H + 1:H + 2, :] = zrow
    hpad_ref[:, 1:H + 1, :] = h1.reshape(N, H, LANES)

    # ---- conv2: 3x3, pad=1, same banded-matmul scheme --------------------------------
    acc2 = jnp.zeros((ROWS, LANES), f32)
    for dy in range(3):
        slab = hpad_ref[:, dy:dy + H, :].reshape(ROWS, LANES)              # (32, 128)
        acc2 = acc2 + jnp.dot(slab, w2_ref[dy], preferred_element_type=f32)
    h2 = bn_train(acc2, vec_ref[2:3, :], vec_ref[3:4, :])

    # ---- shortcut: 1x1 conv on the original (unpadded) rows + bias -------------------
    xc = xin_ref[:, 1:H + 1, :].reshape(ROWS, W * C_IN)                    # (32, 64)
    sc = jnp.dot(xc, wsc_ref[...], preferred_element_type=f32) + vec_ref[4:5, :]

    # ---- residual add + final LeakyReLU, lane-dense store ----------------------------
    out_ref[...] = _lrelu(h2 + sc)


def _banded_conv_weights(w_oihw, c_in):
    """(C_OUT, c_in, 3, 3) -> (3, W*c_in, W*C_OUT): per-dy banded matrices with the dx
    taps and the width zero-padding folded in."""
    wt = jnp.transpose(w_oihw, (2, 3, 1, 0))                   # (dy, dx, ci, o)
    dxs = jnp.arange(3)[:, None, None]
    src = jnp.arange(W)[None, :, None]
    dst = jnp.arange(W)[None, None, :]
    ind = (src == dst + dxs - 1).astype(jnp.float32)           # (3, W, W); OOB taps drop out
    band = jnp.einsum("dsw,ydio->ysiwo", ind, wt)              # (3, W, ci, W, C_OUT)
    return band.reshape(3, W * c_in, W * C_OUT)


def _banded_shortcut_weights(wsc):
    """(C_OUT, C_IN, 1, 1) -> (W*C_IN, W*C_OUT) block-diagonal matrix for the 1x1 conv."""
    wsc_io = wsc.reshape(C_OUT, C_IN).T                        # (ci, o)
    blk = jnp.einsum("sw,io->siwo", jnp.eye(W, dtype=jnp.float32), wsc_io)
    return blk.reshape(W * C_IN, W * C_OUT)


@jax.jit
def resblock_pallas(x_nchw, params):
    """x_nchw: (N, C_IN, H, W) float32. Returns (N, C_OUT, H, W) float32."""
    (w1, b1, g1, be1, w2, b2, g2, be2, wsc, bsc) = params
    del b1, b2  # conv biases cancel against training-mode BN mean subtraction

    # Glue: NHWC, pad height by 1, pack width*channels into the lane dimension.
    x_nhwc = jnp.transpose(x_nchw, (0, 2, 3, 1))
    xin = jnp.pad(x_nhwc, ((0, 0), (1, 1), (0, 0), (0, 0))).reshape(N, H + 2, W * C_IN)

    band1 = _banded_conv_weights(w1, C_IN)        # (3, 64, 128)
    band2 = _banded_conv_weights(w2, C_OUT)       # (3, 128, 128)
    bandsc = _banded_shortcut_weights(wsc)        # (64, 128)
    vecs = jnp.stack([jnp.tile(g1, W), jnp.tile(be1, W), jnp.tile(g2, W),
                      jnp.tile(be2, W), jnp.tile(bsc, W)], axis=0)          # (5, 128)

    vmem = pl.BlockSpec(memory_space=pltpu.MemorySpace.VMEM)
    out_packed = pl.pallas_call(
        resblock_kernel,
        out_shape=jax.ShapeDtypeStruct((ROWS, LANES), jnp.float32),
        in_specs=[vmem] * 5,
        out_specs=vmem,
        scratch_shapes=[pltpu.VMEM((N, H + 2, LANES), jnp.float32)],
    )(xin, band1, band2, bandsc, vecs)

    # (N*H, W*C_OUT) -> (N, C_OUT, H, W); contiguous reshape + cheap XLA transpose.
    return jnp.transpose(out_packed.reshape(N, H, W, C_OUT), (0, 3, 1, 2))


def resblock_reference(x_nchw, params):
    """Pure-JAX reference matching the PyTorch forward (training-mode BN)."""
    (w1, b1, g1, be1, w2, b2, g2, be2, wsc, bsc) = params

    def conv(x, w, b, pad):
        y = jax.lax.conv_general_dilated(
            x, w, window_strides=(1, 1), padding=[(pad, pad), (pad, pad)],
            dimension_numbers=("NCHW", "OIHW", "NCHW"))
        return y + b[None, :, None, None]

    def bn(x, g, be):
        m = jnp.mean(x, axis=(0, 2, 3), keepdims=True)
        v = jnp.mean((x - m) ** 2, axis=(0, 2, 3), keepdims=True)
        return (x - m) * jax.lax.rsqrt(v + EPS) * g[None, :, None, None] + be[None, :, None, None]

    out = _lrelu(bn(conv(x_nchw, w1, b1, 1), g1, be1))
    out = bn(conv(out, w2, b2, 1), g2, be2)
    out = out + conv(x_nchw, wsc, bsc, 0)
    return _lrelu(out)


def make_params(key):
    ks = jax.random.split(key, 10)
    w1 = 0.2 * jax.random.normal(ks[0], (C_OUT, C_IN, 3, 3), jnp.float32)
    b1 = 0.1 * jax.random.normal(ks[1], (C_OUT,), jnp.float32)
    g1 = 1.0 + 0.1 * jax.random.normal(ks[2], (C_OUT,), jnp.float32)
    be1 = 0.1 * jax.random.normal(ks[3], (C_OUT,), jnp.float32)
    w2 = 0.2 * jax.random.normal(ks[4], (C_OUT, C_OUT, 3, 3), jnp.float32)
    b2 = 0.1 * jax.random.normal(ks[5], (C_OUT,), jnp.float32)
    g2 = 1.0 + 0.1 * jax.random.normal(ks[6], (C_OUT,), jnp.float32)
    be2 = 0.1 * jax.random.normal(ks[7], (C_OUT,), jnp.float32)
    wsc = 0.2 * jax.random.normal(ks[8], (C_OUT, C_IN, 1, 1), jnp.float32)
    bsc = 0.1 * jax.random.normal(ks[9], (C_OUT,), jnp.float32)
    return (w1, b1, g1, be1, w2, b2, g2, be2, wsc, bsc)


if __name__ == "__main__":
    key = jax.random.PRNGKey(0)
    k_x, k_p = jax.random.split(key)
    x = jax.random.normal(k_x, (N, C_IN, H, W), jnp.float32)   # NCHW, like PyTorch
    params = make_params(k_p)

    out = resblock_pallas(x, params)
    out = jax.block_until_ready(out)

    ref = jax.block_until_ready(resblock_reference(x, params))
    np.testing.assert_allclose(np.asarray(out), np.asarray(ref), rtol=1e-3, atol=1e-3)

    print("KERNEL_OK")
</pallas_src>

<mosaic_0001>
module attributes {stable_mosaic.version = 11 : i64} {
  func.func @resblock_kernel(%arg0: memref<2x18x64xf32, #tpu.memory_space<vmem>>, %arg1: memref<3x64x128xf32, #tpu.memory_space<vmem>>, %arg2: memref<3x128x128xf32, #tpu.memory_space<vmem>>, %arg3: memref<64x128xf32, #tpu.memory_space<vmem>>, %arg4: memref<5x128xf32, #tpu.memory_space<vmem>>, %arg5: memref<32x128xf32, #tpu.memory_space<vmem>>, %arg6: memref<2x18x128xf32, #tpu.memory_space<vmem>>) attributes {dimension_semantics = [], scalar_prefetch = 0 : i64, scratch_operands = 1 : i64, tpu.core_type = #tpu.core_type<tc>} {
    %0 = tpu.iota {dimensions = array<i32: 0>} : vector<128x128xi32>
    %1 = tpu.iota {dimensions = array<i32: 1>} : vector<128x128xi32>
    %c7_i32 = arith.constant 7 : i32
    %2 = vector.broadcast %c7_i32 : i32 to vector<128x128xi32>
    %3 = arith.andi %0, %2 : vector<128x128xi32>
    %c7_i32_0 = arith.constant 7 : i32
    %4 = vector.broadcast %c7_i32_0 : i32 to vector<128x128xi32>
    %5 = arith.andi %1, %4 : vector<128x128xi32>
    %6 = arith.cmpi eq, %3, %5 : vector<128x128xi32>
    %7 = arith.extui %6 : vector<128x128xi1> to vector<128x128xi32>
    %8 = arith.sitofp %7 : vector<128x128xi32> to vector<128x128xf32>
    %cst = arith.constant 0.000000e+00 : f32
    %9 = vector.broadcast %cst : f32 to vector<32x128xf32>
    %c0 = arith.constant 0 : index
    %c0_1 = arith.constant 0 : index
    %c0_2 = arith.constant 0 : index
    %10 = vector.load %arg0[%c0, %c0_1, %c0_2] : memref<2x18x64xf32, #tpu.memory_space<vmem>>, vector<2x16x64xf32>
    %11 = vector.shape_cast %10 : vector<2x16x64xf32> to vector<32x64xf32>
    %c0_3 = arith.constant 0 : index
    %c0_4 = arith.constant 0 : index
    %c0_5 = arith.constant 0 : index
    %12 = vector.load %arg1[%c0_3, %c0_4, %c0_5] : memref<3x64x128xf32, #tpu.memory_space<vmem>>, vector<1x64x128xf32>
    %13 = vector.shape_cast %12 : vector<1x64x128xf32> to vector<64x128xf32>
    %cst_6 = arith.constant dense<0.000000e+00> : vector<32x128xf32>
    %14 = tpu.matmul %11, %13, %cst_6 {dimension_numbers = #tpu.dot_dimension_numbers<[1], [0], [0], [1], [0, 0, 1, 1], [], []>} : vector<32x64xf32>, vector<64x128xf32>, vector<32x128xf32> -> vector<32x128xf32>
    %15 = arith.addf %9, %14 : vector<32x128xf32>
    %c0_7 = arith.constant 0 : index
    %c1 = arith.constant 1 : index
    %c0_8 = arith.constant 0 : index
    %16 = vector.load %arg0[%c0_7, %c1, %c0_8] : memref<2x18x64xf32, #tpu.memory_space<vmem>>, vector<2x16x64xf32>
    %17 = vector.shape_cast %16 : vector<2x16x64xf32> to vector<32x64xf32>
    %c1_9 = arith.constant 1 : index
    %c0_10 = arith.constant 0 : index
    %c0_11 = arith.constant 0 : index
    %18 = vector.load %arg1[%c1_9, %c0_10, %c0_11] : memref<3x64x128xf32, #tpu.memory_space<vmem>>, vector<1x64x128xf32>
    %19 = vector.shape_cast %18 : vector<1x64x128xf32> to vector<64x128xf32>
    %cst_12 = arith.constant dense<0.000000e+00> : vector<32x128xf32>
    %20 = tpu.matmul %17, %19, %cst_12 {dimension_numbers = #tpu.dot_dimension_numbers<[1], [0], [0], [1], [0, 0, 1, 1], [], []>} : vector<32x64xf32>, vector<64x128xf32>, vector<32x128xf32> -> vector<32x128xf32>
    %21 = arith.addf %15, %20 : vector<32x128xf32>
    %c0_13 = arith.constant 0 : index
    %c2 = arith.constant 2 : index
    %c0_14 = arith.constant 0 : index
    %22 = vector.load %arg0[%c0_13, %c2, %c0_14] : memref<2x18x64xf32, #tpu.memory_space<vmem>>, vector<2x16x64xf32>
    %23 = vector.shape_cast %22 : vector<2x16x64xf32> to vector<32x64xf32>
    %c2_15 = arith.constant 2 : index
    %c0_16 = arith.constant 0 : index
    %c0_17 = arith.constant 0 : index
    %24 = vector.load %arg1[%c2_15, %c0_16, %c0_17] : memref<3x64x128xf32, #tpu.memory_space<vmem>>, vector<1x64x128xf32>
    %25 = vector.shape_cast %24 : vector<1x64x128xf32> to vector<64x128xf32>
    %cst_18 = arith.constant dense<0.000000e+00> : vector<32x128xf32>
    %26 = tpu.matmul %23, %25, %cst_18 {dimension_numbers = #tpu.dot_dimension_numbers<[1], [0], [0], [1], [0, 0, 1, 1], [], []>} : vector<32x64xf32>, vector<64x128xf32>, vector<32x128xf32> -> vector<32x128xf32>
    %27 = arith.addf %21, %26 : vector<32x128xf32>
    %c0_19 = arith.constant 0 : index
    %c0_20 = arith.constant 0 : index
    %28 = vector.load %arg4[%c0_19, %c0_20] : memref<5x128xf32, #tpu.memory_space<vmem>>, vector<1x128xf32>
    %c1_21 = arith.constant 1 : index
    %c0_22 = arith.constant 0 : index
    %29 = vector.load %arg4[%c1_21, %c0_22] : memref<5x128xf32, #tpu.memory_space<vmem>>, vector<1x128xf32>
    %cst_23 = arith.constant dense<0.000000e+00> : vector<128xf32>
    %30 = vector.multi_reduction <add>, %27, %cst_23 [0] : vector<32x128xf32> to vector<128xf32>
    %31 = vector.shape_cast %30 : vector<128xf32> to vector<1x128xf32>
    %cst_24 = arith.constant dense<0.000000e+00> : vector<1x128xf32>
    %32 = tpu.matmul %31, %8, %cst_24 {dimension_numbers = #tpu.dot_dimension_numbers<[1], [0], [0], [1], [0, 0, 1, 1], [], []>} : vector<1x128xf32>, vector<128x128xf32>, vector<1x128xf32> -> vector<1x128xf32>
    %cst_25 = arith.constant 0.001953125 : f32
    %33 = vector.broadcast %cst_25 : f32 to vector<1x128xf32>
    %34 = arith.mulf %32, %33 : vector<1x128xf32>
    %35 = vector.broadcast %34 : vector<1x128xf32> to vector<32x128xf32>
    %36 = arith.subf %27, %35 : vector<32x128xf32>
    %37 = arith.mulf %36, %36 : vector<32x128xf32>
    %cst_26 = arith.constant dense<0.000000e+00> : vector<128xf32>
    %38 = vector.multi_reduction <add>, %37, %cst_26 [0] : vector<32x128xf32> to vector<128xf32>
    %39 = vector.shape_cast %38 : vector<128xf32> to vector<1x128xf32>
    %cst_27 = arith.constant dense<0.000000e+00> : vector<1x128xf32>
    %40 = tpu.matmul %39, %8, %cst_27 {dimension_numbers = #tpu.dot_dimension_numbers<[1], [0], [0], [1], [0, 0, 1, 1], [], []>} : vector<1x128xf32>, vector<128x128xf32>, vector<1x128xf32> -> vector<1x128xf32>
    %cst_28 = arith.constant 0.001953125 : f32
    %41 = vector.broadcast %cst_28 : f32 to vector<1x128xf32>
    %42 = arith.mulf %40, %41 : vector<1x128xf32>
    %cst_29 = arith.constant 9.99999974E-6 : f32
    %43 = vector.broadcast %cst_29 : f32 to vector<1x128xf32>
    %44 = arith.addf %42, %43 : vector<1x128xf32>
    %45 = math.rsqrt %44 : vector<1x128xf32>
    %46 = arith.mulf %28, %45 : vector<1x128xf32>
    %47 = vector.broadcast %46 : vector<1x128xf32> to vector<32x128xf32>
    %48 = arith.mulf %36, %47 : vector<32x128xf32>
    %49 = vector.broadcast %29 : vector<1x128xf32> to vector<32x128xf32>
    %50 = arith.addf %48, %49 : vector<32x128xf32>
    %cst_30 = arith.constant 0.000000e+00 : f32
    %51 = vector.broadcast %cst_30 : f32 to vector<32x128xf32>
    %52 = arith.cmpf ogt, %50, %51 : vector<32x128xf32>
    %cst_31 = arith.constant 1.000000e-01 : f32
    %53 = vector.broadcast %cst_31 : f32 to vector<32x128xf32>
    %54 = arith.mulf %53, %50 : vector<32x128xf32>
    %55 = arith.select %52, %50, %54 : vector<32x128xi1>, vector<32x128xf32>
    %cst_32 = arith.constant 0.000000e+00 : f32
    %56 = vector.broadcast %cst_32 : f32 to vector<2x1x128xf32>
    %c0_33 = arith.constant 0 : index
    %c0_34 = arith.constant 0 : index
    %c0_35 = arith.constant 0 : index
    %57 = vector.load %arg6[%c0_33, %c0_34, %c0_35] : memref<2x18x128xf32, #tpu.memory_space<vmem>>, vector<2x1x128xf32>
    tpu.vector_store %arg6[%c0_33, %c0_34, %c0_35], %56 {strides = array<i32>} : memref<2x18x128xf32, #tpu.memory_space<vmem>>, vector<2x1x128xf32>,
    %c0_36 = arith.constant 0 : index
    %c17 = arith.constant 17 : index
    %c0_37 = arith.constant 0 : index
    %58 = vector.load %arg6[%c0_36, %c17, %c0_37] : memref<2x18x128xf32, #tpu.memory_space<vmem>>, vector<2x1x128xf32>
    tpu.vector_store %arg6[%c0_36, %c17, %c0_37], %56 {strides = array<i32>} : memref<2x18x128xf32, #tpu.memory_space<vmem>>, vector<2x1x128xf32>,
    %59 = vector.shape_cast %55 : vector<32x128xf32> to vector<2x16x128xf32>
    %c0_38 = arith.constant 0 : index
    %c1_39 = arith.constant 1 : index
    %c0_40 = arith.constant 0 : index
    %60 = vector.load %arg6[%c0_38, %c1_39, %c0_40] : memref<2x18x128xf32, #tpu.memory_space<vmem>>, vector<2x16x128xf32>
    tpu.vector_store %arg6[%c0_38, %c1_39, %c0_40], %59 {strides = array<i32>} : memref<2x18x128xf32, #tpu.memory_space<vmem>>, vector<2x16x128xf32>,
    %cst_41 = arith.constant 0.000000e+00 : f32
    %61 = vector.broadcast %cst_41 : f32 to vector<32x128xf32>
    %c0_42 = arith.constant 0 : index
    %c0_43 = arith.constant 0 : index
    %c0_44 = arith.constant 0 : index
    %62 = vector.load %arg6[%c0_42, %c0_43, %c0_44] : memref<2x18x128xf32, #tpu.memory_space<vmem>>, vector<2x16x128xf32>
    %63 = vector.shape_cast %62 : vector<2x16x128xf32> to vector<32x128xf32>
    %c0_45 = arith.constant 0 : index
    %c0_46 = arith.constant 0 : index
    %c0_47 = arith.constant 0 : index
    %64 = vector.load %arg2[%c0_45, %c0_46, %c0_47] : memref<3x128x128xf32, #tpu.memory_space<vmem>>, vector<1x128x128xf32>
    %65 = vector.shape_cast %64 : vector<1x128x128xf32> to vector<128x128xf32>
    %cst_48 = arith.constant dense<0.000000e+00> : vector<32x128xf32>
    %66 = tpu.matmul %63, %65, %cst_48 {dimension_numbers = #tpu.dot_dimension_numbers<[1], [0], [0], [1], [0, 0, 1, 1], [], []>} : vector<32x128xf32>, vector<128x128xf32>, vector<32x128xf32> -> vector<32x128xf32>
    %67 = arith.addf %61, %66 : vector<32x128xf32>
    %c0_49 = arith.constant 0 : index
    %c1_50 = arith.constant 1 : index
    %c0_51 = arith.constant 0 : index
    %68 = vector.load %arg6[%c0_49, %c1_50, %c0_51] : memref<2x18x128xf32, #tpu.memory_space<vmem>>, vector<2x16x128xf32>
    %69 = vector.shape_cast %68 : vector<2x16x128xf32> to vector<32x128xf32>
    %c1_52 = arith.constant 1 : index
    %c0_53 = arith.constant 0 : index
    %c0_54 = arith.constant 0 : index
    %70 = vector.load %arg2[%c1_52, %c0_53, %c0_54] : memref<3x128x128xf32, #tpu.memory_space<vmem>>, vector<1x128x128xf32>
    %71 = vector.shape_cast %70 : vector<1x128x128xf32> to vector<128x128xf32>
    %cst_55 = arith.constant dense<0.000000e+00> : vector<32x128xf32>
    %72 = tpu.matmul %69, %71, %cst_55 {dimension_numbers = #tpu.dot_dimension_numbers<[1], [0], [0], [1], [0, 0, 1, 1], [], []>} : vector<32x128xf32>, vector<128x128xf32>, vector<32x128xf32> -> vector<32x128xf32>
    %73 = arith.addf %67, %72 : vector<32x128xf32>
    %c0_56 = arith.constant 0 : index
    %c2_57 = arith.constant 2 : index
    %c0_58 = arith.constant 0 : index
    %74 = vector.load %arg6[%c0_56, %c2_57, %c0_58] : memref<2x18x128xf32, #tpu.memory_space<vmem>>, vector<2x16x128xf32>
    %75 = vector.shape_cast %74 : vector<2x16x128xf32> to vector<32x128xf32>
    %c2_59 = arith.constant 2 : index
    %c0_60 = arith.constant 0 : index
    %c0_61 = arith.constant 0 : index
    %76 = vector.load %arg2[%c2_59, %c0_60, %c0_61] : memref<3x128x128xf32, #tpu.memory_space<vmem>>, vector<1x128x128xf32>
    %77 = vector.shape_cast %76 : vector<1x128x128xf32> to vector<128x128xf32>
    %cst_62 = arith.constant dense<0.000000e+00> : vector<32x128xf32>
    %78 = tpu.matmul %75, %77, %cst_62 {dimension_numbers = #tpu.dot_dimension_numbers<[1], [0], [0], [1], [0, 0, 1, 1], [], []>} : vector<32x128xf32>, vector<128x128xf32>, vector<32x128xf32> -> vector<32x128xf32>
    %79 = arith.addf %73, %78 : vector<32x128xf32>
    %c2_63 = arith.constant 2 : index
    %c0_64 = arith.constant 0 : index
    %80 = vector.load %arg4[%c2_63, %c0_64] : memref<5x128xf32, #tpu.memory_space<vmem>>, vector<1x128xf32>
    %c3 = arith.constant 3 : index
    %c0_65 = arith.constant 0 : index
    %81 = vector.load %arg4[%c3, %c0_65] : memref<5x128xf32, #tpu.memory_space<vmem>>, vector<1x128xf32>
    %cst_66 = arith.constant dense<0.000000e+00> : vector<128xf32>
    %82 = vector.multi_reduction <add>, %79, %cst_66 [0] : vector<32x128xf32> to vector<128xf32>
    %83 = vector.shape_cast %82 : vector<128xf32> to vector<1x128xf32>
    %cst_67 = arith.constant dense<0.000000e+00> : vector<1x128xf32>
    %84 = tpu.matmul %83, %8, %cst_67 {dimension_numbers = #tpu.dot_dimension_numbers<[1], [0], [0], [1], [0, 0, 1, 1], [], []>} : vector<1x128xf32>, vector<128x128xf32>, vector<1x128xf32> -> vector<1x128xf32>
    %cst_68 = arith.constant 0.001953125 : f32
    %85 = vector.broadcast %cst_68 : f32 to vector<1x128xf32>
    %86 = arith.mulf %84, %85 : vector<1x128xf32>
    %87 = vector.broadcast %86 : vector<1x128xf32> to vector<32x128xf32>
    %88 = arith.subf %79, %87 : vector<32x128xf32>
    %89 = arith.mulf %88, %88 : vector<32x128xf32>
    %cst_69 = arith.constant dense<0.000000e+00> : vector<128xf32>
    %90 = vector.multi_reduction <add>, %89, %cst_69 [0] : vector<32x128xf32> to vector<128xf32>
    %91 = vector.shape_cast %90 : vector<128xf32> to vector<1x128xf32>
    %cst_70 = arith.constant dense<0.000000e+00> : vector<1x128xf32>
    %92 = tpu.matmul %91, %8, %cst_70 {dimension_numbers = #tpu.dot_dimension_numbers<[1], [0], [0], [1], [0, 0, 1, 1], [], []>} : vector<1x128xf32>, vector<128x128xf32>, vector<1x128xf32> -> vector<1x128xf32>
    %cst_71 = arith.constant 0.001953125 : f32
    %93 = vector.broadcast %cst_71 : f32 to vector<1x128xf32>
    %94 = arith.mulf %92, %93 : vector<1x128xf32>
    %cst_72 = arith.constant 9.99999974E-6 : f32
    %95 = vector.broadcast %cst_72 : f32 to vector<1x128xf32>
    %96 = arith.addf %94, %95 : vector<1x128xf32>
    %97 = math.rsqrt %96 : vector<1x128xf32>
    %98 = arith.mulf %80, %97 : vector<1x128xf32>
    %99 = vector.broadcast %98 : vector<1x128xf32> to vector<32x128xf32>
    %100 = arith.mulf %88, %99 : vector<32x128xf32>
    %101 = vector.broadcast %81 : vector<1x128xf32> to vector<32x128xf32>
    %102 = arith.addf %100, %101 : vector<32x128xf32>
    %c0_73 = arith.constant 0 : index
    %c1_74 = arith.constant 1 : index
    %c0_75 = arith.constant 0 : index
    %103 = vector.load %arg0[%c0_73, %c1_74, %c0_75] : memref<2x18x64xf32, #tpu.memory_space<vmem>>, vector<2x16x64xf32>
    %104 = vector.shape_cast %103 : vector<2x16x64xf32> to vector<32x64xf32>
    %c0_76 = arith.constant 0 : index
    %c0_77 = arith.constant 0 : index
    %105 = vector.load %arg3[%c0_76, %c0_77] : memref<64x128xf32, #tpu.memory_space<vmem>>, vector<64x128xf32>
    %cst_78 = arith.constant dense<0.000000e+00> : vector<32x128xf32>
    %106 = tpu.matmul %104, %105, %cst_78 {dimension_numbers = #tpu.dot_dimension_numbers<[1], [0], [0], [1], [0, 0, 1, 1], [], []>} : vector<32x64xf32>, vector<64x128xf32>, vector<32x128xf32> -> vector<32x128xf32>
    %c4 = arith.constant 4 : index
    %c0_79 = arith.constant 0 : index
    %107 = vector.load %arg4[%c4, %c0_79] : memref<5x128xf32, #tpu.memory_space<vmem>>, vector<1x128xf32>
    %108 = vector.broadcast %107 : vector<1x128xf32> to vector<32x128xf32>
    %109 = arith.addf %106, %108 : vector<32x128xf32>
    %110 = arith.addf %102, %109 : vector<32x128xf32>
    %cst_80 = arith.constant 0.000000e+00 : f32
    %111 = vector.broadcast %cst_80 : f32 to vector<32x128xf32>
    %112 = arith.cmpf ogt, %110, %111 : vector<32x128xf32>
    %cst_81 = arith.constant 1.000000e-01 : f32
    %113 = vector.broadcast %cst_81 : f32 to vector<32x128xf32>
    %114 = arith.mulf %113, %110 : vector<32x128xf32>
    %115 = arith.select %112, %110, %114 : vector<32x128xi1>, vector<32x128xf32>
    %c0_82 = arith.constant 0 : index
    %c0_83 = arith.constant 0 : index
    %116 = vector.load %arg5[%c0_82, %c0_83] : memref<32x128xf32, #tpu.memory_space<vmem>>, vector<32x128xf32>
    tpu.vector_store %arg5[%c0_82, %c0_83], %115 {strides = array<i32>} : memref<32x128xf32, #tpu.memory_space<vmem>>, vector<32x128xf32>,
    return
  }
}

</mosaic_0001>

<llo_original>
// kernel: tile.28
$region0: #{tile.28}
  #allocation0 [shape = 's32[1]{0}', space=sflag, size = 0x4, scoped, tag = 'scoped memory for tile.28']
  %s0 = inlined_call_operand.vmem [shape: f32[8], index: 0, kind: input, shape index: {}]
  %s1 = inlined_call_operand.vmem [shape: f32[16,8], index: 1, kind: output, shape index: {}]
  // Predicated region
  $region2: #{tile.28} parent=0 // pred_check
    _
  $region3: #{tile.28} parent=0 // pred_check_branch
    %3 = sbr.rel (0) target = $region5
  $region4: #{tile.28} parent=0 // pred_region
    _
  $region5: #{tile.28} parent=0 // pred_fallthru
    _
  %v4 = vld [vmem:[%s0] ss:$0 sm:$0xff]
  %5 = vst [vmem:[%s1] sm:$0xff] %v4
  %s6 = scalar_lea.vmem %s1, 8
  %7 = vst [vmem:[%s6] sm:$0xff] %v4

// kernel: tile.45
$region0: #{tile.45}
  %s0 = inlined_call_operand.vmem [shape: f32[16,8], index: 0, kind: input, shape index: {}]
  %s1 = inlined_call_operand.vmem [shape: f32[1,128], index: 1, kind: output, shape index: {}]
  $region1: #{tile.45} parent=0
    #allocation0 [shape = 'u8[4096]{0}', space=vmem, size = 0x1000, scoped, tag = 'scoped mem for output reshape']
    %v2 = vld [vmem:[%s0] sm:$0x1]
    %vm3 = vcmask 64512
    %4 = vst.msk [vmem:[#allocation0] sm:$0x1] %vm3, %v2
    %s5 = scalar_lea.vmem %s0, 15
    %v6 = vld [vmem:[%s5] sm:$0x1]
    %7 = vrot.lane.b32.xlu0 %v6, 120
    %v8 = vpop.permute.xlu0 %7
    %vm9 = vcmask 1048512
    %10 = vst.msk [vmem:[#allocation0] sm:$0x1] %vm9, %v8
    %s11 = scalar_lea.vmem %s0, 14
    %v12 = vld [vmem:[%s11] sm:$0x1]
    %13 = vrot.lane.b32.xlu0 %v12, 112
    %v14 = vpop.permute.xlu0 %13
    %vm15 = vcmask 982912
    %16 = vst.msk [vmem:[#allocation0] sm:$0x1] %vm15, %v14
    %s17 = scalar_lea.vmem %s0, 13
    %v18 = vld [vmem:[%s17] sm:$0x1]
    %19 = vrot.lane.b32.xlu0 %v18, 104
    %v20 = vpop.permute.xlu0 %19
    %vm21 = vcmask 917312
    %22 = vst.msk [vmem:[#allocation0] sm:$0x1] %vm21, %v20
    %s23 = scalar_lea.vmem %s0, 12
    %v24 = vld [vmem:[%s23] sm:$0x1]
    %25 = vrot.lane.b32.xlu0 %v24, 96
    %v26 = vpop.permute.xlu0 %25
    %vm27 = vcmask 851712
    %28 = vst.msk [vmem:[#allocation0] sm:$0x1] %vm27, %v26
    %s29 = scalar_lea.vmem %s0, 11
    %v30 = vld [vmem:[%s29] sm:$0x1]
    %31 = vrot.lane.b32.xlu0 %v30, 88
    %v32 = vpop.permute.xlu0 %31
    %vm33 = vcmask 786112
    %34 = vst.msk [vmem:[#allocation0] sm:$0x1] %vm33, %v32
    %s35 = scalar_lea.vmem %s0, 10
    %v36 = vld [vmem:[%s35] sm:$0x1]
    %37 = vrot.lane.b32.xlu0 %v36, 80
    %v38 = vpop.permute.xlu0 %37
    %vm39 = vcmask 720512
    %40 = vst.msk [vmem:[#allocation0] sm:$0x1] %vm39, %v38
    %s41 = scalar_lea.vmem %s0, 9
    %v42 = vld [vmem:[%s41] sm:$0x1]
    %43 = vrot.lane.b32.xlu0 %v42, 72
    %v44 = vpop.permute.xlu0 %43
    %vm45 = vcmask 654912
    %46 = vst.msk [vmem:[#allocation0] sm:$0x1] %vm45, %v44
    %s47 = scalar_lea.vmem %s0, 8
    %v48 = vld [vmem:[%s47] sm:$0x1]
    %49 = vrot.lane.b32.xlu0 %v48, 64
    %v50 = vpop.permute.xlu0 %49
    %vm51 = vcmask 589312
    %52 = vst.msk [vmem:[#allocation0] sm:$0x1] %vm51, %v50
    %s53 = scalar_lea.vmem %s0, 7
    %v54 = vld [vmem:[%s53] sm:$0x1]
    %55 = vrot.lane.b32.xlu0 %v54, 56
    %v56 = vpop.permute.xlu0 %55
    %vm57 = vcmask 523712
    %58 = vst.msk [vmem:[#allocation0] sm:$0x1] %vm57, %v56
    %s59 = scalar_lea.vmem %s0, 6
    %v60 = vld [vmem:[%s59] sm:$0x1]
    %61 = vrot.lane.b32.xlu0 %v60, 48
    %v62 = vpop.permute.xlu0 %61
    %vm63 = vcmask 458112
    %64 = vst.msk [vmem:[#allocation0] sm:$0x1] %vm63, %v62
    %s65 = scalar_lea.vmem %s0, 5
    %v66 = vld [vmem:[%s65] sm:$0x1]
    %67 = vrot.lane.b32.xlu0 %v66, 40
    %v68 = vpop.permute.xlu0 %67
    %vm69 = vcmask 392512
    %70 = vst.msk [vmem:[#allocation0] sm:$0x1] %vm69, %v68
    %s71 = scalar_lea.vmem %s0, 4
    %v72 = vld [vmem:[%s71] sm:$0x1]
    %73 = vrot.lane.b32.xlu0 %v72, 32
    %v74 = vpop.permute.xlu0 %73
    %vm75 = vcmask 326912
    %76 = vst.msk [vmem:[#allocation0] sm:$0x1] %vm75, %v74
    %s77 = scalar_lea.vmem %s0, 3
    %v78 = vld [vmem:[%s77] sm:$0x1]
    %79 = vrot.lane.b32.xlu0 %v78, 24
    %v80 = vpop.permute.xlu0 %79
    %vm81 = vcmask 261312
    %82 = vst.msk [vmem:[#allocation0] sm:$0x1] %vm81, %v80
    %s83 = scalar_lea.vmem %s0, 2
    %v84 = vld [vmem:[%s83] sm:$0x1]
    %85 = vrot.lane.b32.xlu0 %v84, 16
    %v86 = vpop.permute.xlu0 %85
    %vm87 = vcmask 195712
    %88 = vst.msk [vmem:[#allocation0] sm:$0x1] %vm87, %v86
    %s89 = scalar_lea.vmem %s0, 1
    %v90 = vld [vmem:[%s89] sm:$0x1]
    %91 = vrot.lane.b32.xlu0 %v90, 8
    %v92 = vpop.permute.xlu0 %91
    %vm93 = vcmask 130112
    %94 = vst.msk [vmem:[#allocation0] sm:$0x1] %vm93, %v92
    %s96 = sshllo.u32 0, 1
    %v98 = vld [vmem:[#allocation0] sm:%s96]
    %s99 = sshllo.u32 0, 1
    %100 = vst [vmem:[%s1] sm:%s99] %v98

// kernel: resblock_pallas.1
$region0: #{resblock_pallas.1}
  #allocation0 [shape = 'u32[]', space=smem, size = 0x4, offset = 0x4, fixed_abs, tag = 'smem constant byte address 0x4 - core index']
  #allocation1 [shape = 'u32[144,128]{1,0:T(1,128)}', space=vmem, size = 0x12000, scoped, tag = 'internal scratch']
  #allocation2 [shape = 'f32[2,18,128]{2,1,0:T(8,128)}', space=vmem, size = 0x6000, scoped, tag = 'scratch operand']
  %s0 = inlined_call_operand.vmem [shape: f32[2,18,64], index: 0, kind: input, shape index: {}]
  %s1 = inlined_call_operand.vmem [shape: f32[3,64,128], index: 1, kind: input, shape index: {}]
  %s2 = inlined_call_operand.vmem [shape: f32[3,128,128], index: 2, kind: input, shape index: {}]
  %s3 = inlined_call_operand.vmem [shape: f32[64,128], index: 3, kind: input, shape index: {}]
  %s4 = inlined_call_operand.vmem [shape: f32[5,128], index: 4, kind: input, shape index: {}]
  %s5 = inlined_call_operand.vmem [shape: f32[32,128], index: 5, kind: output, shape index: {}]
  %s6 = sld [smem:[#allocation0]]
  $region30: #{resblock_pallas.1} parent=0
    _
  %s8 = ssub.s32 1, %s6
  %s9 = scalar_select 0, %s8, %s6
  // Predicated region
  $region2: #{resblock_pallas.1} parent=0 // pred_check
    _
  $region3: #{resblock_pallas.1} parent=0 // pred_check_branch
    %11 = sbr.rel (0) target = $region5
  $region4: #{resblock_pallas.1} parent=0 // pred_region
    _
  $region5: #{resblock_pallas.1} parent=0 // pred_fallthru
    _
  // Predicated region
  $region6: #{resblock_pallas.1} parent=0 // pred_check
    _
  $region7: #{resblock_pallas.1} parent=0 // pred_check_branch
    %13 = sbr.rel (0) target = $region9
  $region8: #{resblock_pallas.1} parent=0 // pred_region
    _
  $region9: #{resblock_pallas.1} parent=0 // pred_fallthru
    _
  // Predicated region
  $region10: #{resblock_pallas.1} parent=0 // pred_check
    _
  $region11: #{resblock_pallas.1} parent=0 // pred_check_branch
    %15 = sbr.rel (0) target = $region13
  $region12: #{resblock_pallas.1} parent=0 // pred_region
    _
  $region13: #{resblock_pallas.1} parent=0 // pred_fallthru
    _
  // Predicated region
  $region14: #{resblock_pallas.1} parent=0 // pred_check
    _
  $region15: #{resblock_pallas.1} parent=0 // pred_check_branch
    %17 = sbr.rel (0) target = $region17
  $region16: #{resblock_pallas.1} parent=0 // pred_region
    _
  $region17: #{resblock_pallas.1} parent=0 // pred_fallthru
    _
  // Predicated region
  $region18: #{resblock_pallas.1} parent=0 // pred_check
    _
  $region19: #{resblock_pallas.1} parent=0 // pred_check_branch
    %19 = sbr.rel (0) target = $region21
  $region20: #{resblock_pallas.1} parent=0 // pred_region
    _
  $region21: #{resblock_pallas.1} parent=0 // pred_fallthru
    _
  %v20 = vlaneseq
  %v21 = vshrl.u32 %v20, 7
  %v22 = vadd.s32 %v21, 8
  %v23 = vadd.s32 %v21, 16
  %v24 = vadd.s32 %v21, 24
  %v25 = vadd.s32 %v21, 32
  %v26 = vadd.s32 %v21, 40
  %v27 = vadd.s32 %v21, 48
  %v28 = vadd.s32 %v21, 56
  %v29 = vadd.s32 %v21, 64
  %v30 = vadd.s32 %v21, 72
  %v31 = vadd.s32 %v21, 80
  %v32 = vadd.s32 %v21, 88
  %v33 = vadd.s32 %v21, 96
  %v34 = vadd.s32 %v21, 104
  %v35 = vadd.s32 %v21, 112
  %v36 = vadd.s32 %v21, 120
  %v37 = vlaneseq
  %v38 = vand.u32 %v37, 127
  %v39 = vand.u32 %v21, 7
  %v40 = vand.u32 %v22, 7
  %v41 = vand.u32 %v23, 7
  %v42 = vand.u32 %v24, 7
  %v43 = vand.u32 %v25, 7
  %v44 = vand.u32 %v26, 7
  %v45 = vand.u32 %v27, 7
  %v46 = vand.u32 %v28, 7
  %v47 = vand.u32 %v29, 7
  %v48 = vand.u32 %v30, 7
  %v49 = vand.u32 %v31, 7
  %v50 = vand.u32 %v32, 7
  %v51 = vand.u32 %v33, 7
  %v52 = vand.u32 %v34, 7
  %v53 = vand.u32 %v35, 7
  %v54 = vand.u32 %v36, 7
  %v55 = vand.u32 %v38, 7
  %vm56 = vcmp.eq.s32.totalorder %v39, %v55
  %vm57 = vcmp.eq.s32.totalorder %v40, %v55
  %vm58 = vcmp.eq.s32.totalorder %v41, %v55
  %vm59 = vcmp.eq.s32.totalorder %v42, %v55
  %vm60 = vcmp.eq.s32.totalorder %v43, %v55
  %vm61 = vcmp.eq.s32.totalorder %v44, %v55
  %vm62 = vcmp.eq.s32.totalorder %v45, %v55
  %vm63 = vcmp.eq.s32.totalorder %v46, %v55
  %vm64 = vcmp.eq.s32.totalorder %v47, %v55
  %vm65 = vcmp.eq.s32.totalorder %v48, %v55
  %vm66 = vcmp.eq.s32.totalorder %v49, %v55
  %vm67 = vcmp.eq.s32.totalorder %v50, %v55
  %vm68 = vcmp.eq.s32.totalorder %v51, %v55
  %vm69 = vcmp.eq.s32.totalorder %v52, %v55
  %vm70 = vcmp.eq.s32.totalorder %v53, %v55
  %vm71 = vcmp.eq.s32.totalorder %v54, %v55
  %v72 = vsel %vm56, 1, 0
  %v73 = vsel %vm57, 1, 0
  %v74 = vsel %vm58, 1, 0
  %v75 = vsel %vm59, 1, 0
  %v76 = vsel %vm60, 1, 0
  %v77 = vsel %vm61, 1, 0
  %v78 = vsel %vm62, 1, 0
  %v79 = vsel %vm63, 1, 0
  %v80 = vsel %vm64, 1, 0
  %v81 = vsel %vm65, 1, 0
  %v82 = vsel %vm66, 1, 0
  %v83 = vsel %vm67, 1, 0
  %v84 = vsel %vm68, 1, 0
  %v85 = vsel %vm69, 1, 0
  %v86 = vsel %vm70, 1, 0
  %v87 = vsel %vm71, 1, 0
  %v88 = vcvt.s32.f32 %v72
  %v89 = vcvt.s32.f32 %v73
  %v90 = vcvt.s32.f32 %v74
  %v91 = vcvt.s32.f32 %v75
  %v92 = vcvt.s32.f32 %v76
  %v93 = vcvt.s32.f32 %v77
  %v94 = vcvt.s32.f32 %v78
  %v95 = vcvt.s32.f32 %v79
  %v96 = vcvt.s32.f32 %v80
  %v97 = vcvt.s32.f32 %v81
  %v98 = vcvt.s32.f32 %v82
  %v99 = vcvt.s32.f32 %v83
  %v100 = vcvt.s32.f32 %v84
  %v101 = vcvt.s32.f32 %v85
  %v102 = vcvt.s32.f32 %v86
  %v103 = vcvt.s32.f32 %v87
  %v104 = vld [vmem:[%s0] sm:$0xff]
  %v105 = vld [vmem:[%s0 + $0x8] sm:$0xff]
  %v106 = vld [vmem:[%s0 + $0x18] sm:$0xff]
  %v107 = vld [vmem:[%s0 + $0x20] sm:$0xff]
  %v108 = vld [vmem:[%s1] sm:$0xff]
  %v109 = vld [vmem:[%s1 + $0x8] sm:$0xff]
  %v110 = vld [vmem:[%s1 + $0x10] sm:$0xff]
  %v111 = vld [vmem:[%s1 + $0x18] sm:$0xff]
  %v112 = vld [vmem:[%s1 + $0x20] sm:$0xff]
  %v113 = vld [vmem:[%s1 + $0x28] sm:$0xff]
  %v114 = vld [vmem:[%s1 + $0x30] sm:$0xff]
  %v115 = vld [vmem:[%s1 + $0x38] sm:$0xff]
  %v116 = vld [vmem:[%s0 + $0x1] sm:$0xff]
  %v117 = vld [vmem:[%s0 + $0x9] sm:$0xff]
  %v118 = vld [vmem:[%s0 + $0x19] sm:$0xff]
  %v119 = vld [vmem:[%s0 + $0x21] sm:$0xff]
  %s120 = scalar_lea.vmem %s1, 64
  %v121 = vld [vmem:[%s120] sm:$0xff]
  %v122 = vld [vmem:[%s120 + $0x8] sm:$0xff]
  %v123 = vld [vmem:[%s120 + $0x10] sm:$0xff]
  %v124 = vld [vmem:[%s120 + $0x18] sm:$0xff]
  %v125 = vld [vmem:[%s120 + $0x20] sm:$0xff]
  %v126 = vld [vmem:[%s120 + $0x28] sm:$0xff]
  %v127 = vld [vmem:[%s120 + $0x30] sm:$0xff]
  %v128 = vld [vmem:[%s120 + $0x38] sm:$0xff]
  %vm129 = vcmask 523264
  %v131 = vsel %vm129, %v116, 0
  %v134 = vsel %vm129, %v117, 0
  %v137 = vsel %vm129, %v118, 0
  %v140 = vsel %vm129, %v119, 0
  %142 = vmatprep.subr.mxu0 0.0
  %143 = vmatpush1.msra.mxu0 %v121
  %144 = vmatprep.subr.mxu0 0.0
  %145 = vmatpush1.msra.mxu0 %v122
  %146 = vmatprep.subr.mxu0 0.0
  %147 = vmatpush1.msra.mxu0 %v123
  %148 = vmatprep.subr.mxu0 0.0
  %149 = vmatpush1.msra.mxu0 %v124
  %150 = vmatprep.subr.mxu0 0.0
  %151 = vmatpush1.msra.mxu0 %v125
  %152 = vmatprep.subr.mxu0 0.0
  %153 = vmatpush1.msra.mxu0 %v126
  %154 = vmatprep.subr.mxu0 0.0
  %155 = vmatpush1.msra.mxu0 %v127
  %156 = vmatprep.subr.mxu0 0.0
  %157 = vmatpush1.msra.mxu0 %v128
  %158 = vmatprep.subr.mxu0 0.0
  %159 = vmatpush1.msra.mxu0 0.0
  %160 = vmatprep.subr.mxu0 0.0
  %161 = vmatpush1.msra.mxu0 0.0
  %162 = vmatprep.subr.mxu0 0.0
  %163 = vmatpush1.msra.mxu0 0.0
  %164 = vmatprep.subr.mxu0 0.0
  %165 = vmatpush1.msra.mxu0 0.0
  %166 = vmatprep.subr.mxu0 0.0
  %167 = vmatpush1.msra.mxu0 0.0
  %168 = vmatprep.subr.mxu0 0.0
  %169 = vmatpush1.msra.mxu0 0.0
  %170 = vmatprep.subr.mxu0 0.0
  %171 = vmatpush1.msra.mxu0 0.0
  %172 = vmatprep.subr.mxu0 0.0
  %173 = vmatpush1.msra.mxu0 0.0
  %174 = vmatprep.subr.mxu0 0.0
  %175 = vmatpush1.msra.mxu0 0.0
  %176 = vmatprep.subr.mxu0 0.0
  %177 = vmatpush1.msra.mxu0 0.0
  %178 = vmatprep.subr.mxu0 0.0
  %179 = vmatpush1.msra.mxu0 0.0
  %180 = vmatprep.subr.mxu0 0.0
  %181 = vmatpush1.msra.mxu0 0.0
  %182 = vmatprep.subr.mxu0 0.0
  %183 = vmatpush1.msra.mxu0 0.0
  %184 = vmatprep.subr.mxu0 0.0
  %185 = vmatpush1.msra.mxu0 0.0
  %186 = vmatprep.subr.mxu0 0.0
  %187 = vmatpush1.msra.mxu0 0.0
  %188 = vmatprep.subr.mxu0 0.0
  %189 = vmatpush1.msra.mxu0 0.0
  %190 = vmatprep.subr.mxu0 0.0
  %191 = vmatpush1.msra.mxu0 0.0
  %192 = vmatprep.subr.mxu0 0.0
  %193 = vmatpush1.msra.mxu0 0.0
  %194 = vmatprep.subr.mxu0 0.0
  %195 = vmatpush1.msra.mxu0 0.0
  %196 = vmatprep.subr.mxu0 0.0
  %197 = vmatpush1.msra.mxu0 0.0
  %198 = vmatprep.subr.mxu0 0.0
  %199 = vmatpush1.msra.mxu0 0.0
  %200 = vmatprep.subr.mxu0 0.0
  %201 = vmatpush1.msra.mxu0 0.0
  %202 = vmatprep.subr.mxu0 0.0
  %203 = vmatpush1.msra.mxu0 0.0
  %204 = vmatprep.subr.mxu0 0.0
  %205 = vmatpush1.msra.mxu0 0.0
  %206 = vmatprep.mubr.f32.mxu0 0.0
  %207 = vmatmul.mubr.f32.gmra.mrb[0].mxu0 %v131
  %v208 = vpop.f32.mrb[0].mxu0
  %v209 = vadd.f32 0.0, %v208
  %v210 = vpop.f32.mrb[0].mxu0
  %211 = vmatprep.mubr.f32.mxu0 0.0
  %212 = vmatmul.mubr.f32.gmra.mrb[0].mxu0 %v134
  %v213 = vpop.f32.mrb[0].mxu0
  %v214 = vadd.f32 0.0, %v213
  %v215 = vpop.f32.mrb[0].mxu0
  %216 = vmatprep.mubr.f32.mxu0 0.0
  %217 = vmatmul.mubr.f32.gmra.mrb[0].mxu0 %v137
  %v218 = vpop.f32.mrb[0].mxu0
  %v219 = vadd.f32 0.0, %v218
  %v220 = vpop.f32.mrb[0].mxu0
  %221 = vmatprep.mubr.f32.mxu0 0.0
  %222 = vmatmul.mubr.f32.gmra.mrb[0].mxu0 %v140
  %v223 = vpop.f32.mrb[0].mxu0
  %v224 = vadd.f32 0.0, %v223
  %v225 = vpop.f32.mrb[0].mxu0
  %226 = vdwg.mxu0
  %v228 = vsel %vm129, %v104, 0
  %v231 = vsel %vm129, %v105, 0
  %v234 = vsel %vm129, %v106, 0
  %v237 = vsel %vm129, %v107, 0
  %239 = vmatprep.subr.mxu0 0.0
  %240 = vmatpush1.msra.mxu0 %v108
  %241 = vmatprep.subr.mxu0 0.0
  %242 = vmatpush1.msra.mxu0 %v109
  %243 = vmatprep.subr.mxu0 0.0
  %244 = vmatpush1.msra.mxu0 %v110
  %245 = vmatprep.subr.mxu0 0.0
  %246 = vmatpush1.msra.mxu0 %v111
  %247 = vmatprep.subr.mxu0 0.0
  %248 = vmatpush1.msra.mxu0 %v112
  %249 = vmatprep.subr.mxu0 0.0
  %250 = vmatpush1.msra.mxu0 %v113
  %251 = vmatprep.subr.mxu0 0.0
  %252 = vmatpush1.msra.mxu0 %v114
  %253 = vmatprep.subr.mxu0 0.0
  %254 = vmatpush1.msra.mxu0 %v115
  %255 = vmatprep.subr.mxu0 0.0
  %256 = vmatpush1.msra.mxu0 0.0
  %257 = vmatprep.subr.mxu0 0.0
  %258 = vmatpush1.msra.mxu0 0.0
  %259 = vmatprep.subr.mxu0 0.0
  %260 = vmatpush1.msra.mxu0 0.0
  %261 = vmatprep.subr.mxu0 0.0
  %262 = vmatpush1.msra.mxu0 0.0
  %263 = vmatprep.subr.mxu0 0.0
  %264 = vmatpush1.msra.mxu0 0.0
  %265 = vmatprep.subr.mxu0 0.0
  %266 = vmatpush1.msra.mxu0 0.0
  %267 = vmatprep.subr.mxu0 0.0
  %268 = vmatpush1.msra.mxu0 0.0
  %269 = vmatprep.subr.mxu0 0.0
  %270 = vmatpush1.msra.mxu0 0.0
  %271 = vmatprep.subr.mxu0 0.0
  %272 = vmatpush1.msra.mxu0 0.0
  %273 = vmatprep.subr.mxu0 0.0
  %274 = vmatpush1.msra.mxu0 0.0
  %275 = vmatprep.subr.mxu0 0.0
  %276 = vmatpush1.msra.mxu0 0.0
  %277 = vmatprep.subr.mxu0 0.0
  %278 = vmatpush1.msra.mxu0 0.0
  %279 = vmatprep.subr.mxu0 0.0
  %280 = vmatpush1.msra.mxu0 0.0
  %281 = vmatprep.subr.mxu0 0.0
  %282 = vmatpush1.msra.mxu0 0.0
  %283 = vmatprep.subr.mxu0 0.0
  %284 = vmatpush1.msra.mxu0 0.0
  %285 = vmatprep.subr.mxu0 0.0
  %286 = vmatpush1.msra.mxu0 0.0
  %287 = vmatprep.subr.mxu0 0.0
  %288 = vmatpush1.msra.mxu0 0.0
  %289 = vmatprep.subr.mxu0 0.0
  %290 = vmatpush1.msra.mxu0 0.0
  %291 = vmatprep.subr.mxu0 0.0
  %292 = vmatpush1.msra.mxu0 0.0
  %293 = vmatprep.subr.mxu0 0.0
  %294 = vmatpush1.msra.mxu0 0.0
  %295 = vmatprep.subr.mxu0 0.0
  %296 = vmatpush1.msra.mxu0 0.0
  %297 = vmatprep.subr.mxu0 0.0
  %298 = vmatpush1.msra.mxu0 0.0
  %299 = vmatprep.subr.mxu0 0.0
  %300 = vmatpush1.msra.mxu0 0.0
  %301 = vmatprep.subr.mxu0 0.0
  %302 = vmatpush1.msra.mxu0 0.0
  %303 = vmatprep.mubr.f32.mxu0 0.0
  %304 = vmatmul.mubr.f32.gmra.mrb[0].mxu0 %v228
  %v305 = vpop.f32.mrb[0].mxu0
  %v306 = vadd.f32 %v209, %v305
  %v307 = vpop.f32.mrb[0].mxu0
  %308 = vmatprep.mubr.f32.mxu0 0.0
  %309 = vmatmul.mubr.f32.gmra.mrb[0].mxu0 %v231
  %v310 = vpop.f32.mrb[0].mxu0
  %v311 = vadd.f32 %v214, %v310
  %v312 = vpop.f32.mrb[0].mxu0
  %313 = vmatprep.mubr.f32.mxu0 0.0
  %314 = vmatmul.mubr.f32.gmra.mrb[0].mxu0 %v234
  %v315 = vpop.f32.mrb[0].mxu0
  %v316 = vadd.f32 %v219, %v315
  %v317 = vpop.f32.mrb[0].mxu0
  %318 = vmatprep.mubr.f32.mxu0 0.0
  %319 = vmatmul.mubr.f32.gmra.mrb[0].mxu0 %v237
  %v320 = vpop.f32.mrb[0].mxu0
  %v321 = vadd.f32 %v224, %v320
  %v322 = vpop.f32.mrb[0].mxu0
  %323 = vdwg.mxu0
  %v324 = vld [vmem:[%s0 + $0x2] sm:$0xff]
  %v325 = vld [vmem:[%s0 + $0xa] sm:$0xff]
  %v326 = vld [vmem:[%s0 + $0x1a] sm:$0xff]
  %v327 = vld [vmem:[%s0 + $0x22] sm:$0xff]
  %s328 = scalar_lea.vmem %s1, 128
  %v329 = vld [vmem:[%s328] sm:$0xff]
  %v330 = vld [vmem:[%s328 + $0x8] sm:$0xff]
  %v331 = vld [vmem:[%s328 + $0x10] sm:$0xff]
  %v332 = vld [vmem:[%s328 + $0x18] sm:$0xff]
  %v333 = vld [vmem:[%s328 + $0x20] sm:$0xff]
  %v334 = vld [vmem:[%s328 + $0x28] sm:$0xff]
  %v335 = vld [vmem:[%s328 + $0x30] sm:$0xff]
  %v336 = vld [vmem:[%s328 + $0x38] sm:$0xff]
  %v338 = vsel %vm129, %v324, 0
  %v341 = vsel %vm129, %v325, 0
  %v344 = vsel %vm129, %v326, 0
  %v347 = vsel %vm129, %v327, 0
  %349 = vmatprep.subr.mxu0 0.0
  %350 = vmatpush1.msra.mxu0 %v329
  %351 = vmatprep.subr.mxu0 0.0
  %352 = vmatpush1.msra.mxu0 %v330
  %353 = vmatprep.subr.mxu0 0.0
  %354 = vmatpush1.msra.mxu0 %v331
  %355 = vmatprep.subr.mxu0 0.0
  %356 = vmatpush1.msra.mxu0 %v332
  %357 = vmatprep.subr.mxu0 0.0
  %358 = vmatpush1.msra.mxu0 %v333
  %359 = vmatprep.subr.mxu0 0.0
  %360 = vmatpush1.msra.mxu0 %v334
  %361 = vmatprep.subr.mxu0 0.0
  %362 = vmatpush1.msra.mxu0 %v335
  %363 = vmatprep.subr.mxu0 0.0
  %364 = vmatpush1.msra.mxu0 %v336
  %365 = vmatprep.subr.mxu0 0.0
  %366 = vmatpush1.msra.mxu0 0.0
  %367 = vmatprep.subr.mxu0 0.0
  %368 = vmatpush1.msra.mxu0 0.0
  %369 = vmatprep.subr.mxu0 0.0
  %370 = vmatpush1.msra.mxu0 0.0
  %371 = vmatprep.subr.mxu0 0.0
  %372 = vmatpush1.msra.mxu0 0.0
  %373 = vmatprep.subr.mxu0 0.0
  %374 = vmatpush1.msra.mxu0 0.0
  %375 = vmatprep.subr.mxu0 0.0
  %376 = vmatpush1.msra.mxu0 0.0
  %377 = vmatprep.subr.mxu0 0.0
  %378 = vmatpush1.msra.mxu0 0.0
  %379 = vmatprep.subr.mxu0 0.0
  %380 = vmatpush1.msra.mxu0 0.0
  %381 = vmatprep.subr.mxu0 0.0
  %382 = vmatpush1.msra.mxu0 0.0
  %383 = vmatprep.subr.mxu0 0.0
  %384 = vmatpush1.msra.mxu0 0.0
  %385 = vmatprep.subr.mxu0 0.0
  %386 = vmatpush1.msra.mxu0 0.0
  %387 = vmatprep.subr.mxu0 0.0
  %388 = vmatpush1.msra.mxu0 0.0
  %389 = vmatprep.subr.mxu0 0.0
  %390 = vmatpush1.msra.mxu0 0.0
  %391 = vmatprep.subr.mxu0 0.0
  %392 = vmatpush1.msra.mxu0 0.0
  %393 = vmatprep.subr.mxu0 0.0
  %394 = vmatpush1.msra.mxu0 0.0
  %395 = vmatprep.subr.mxu0 0.0
  %396 = vmatpush1.msra.mxu0 0.0
  %397 = vmatprep.subr.mxu0 0.0
  %398 = vmatpush1.msra.mxu0 0.0
  %399 = vmatprep.subr.mxu0 0.0
  %400 = vmatpush1.msra.mxu0 0.0
  %401 = vmatprep.subr.mxu0 0.0
  %402 = vmatpush1.msra.mxu0 0.0
  %403 = vmatprep.subr.mxu0 0.0
  %404 = vmatpush1.msra.mxu0 0.0
  %405 = vmatprep.subr.mxu0 0.0
  %406 = vmatpush1.msra.mxu0 0.0
  %407 = vmatprep.subr.mxu0 0.0
  %408 = vmatpush1.msra.mxu0 0.0
  %409 = vmatprep.subr.mxu0 0.0
  %410 = vmatpush1.msra.mxu0 0.0
  %411 = vmatprep.subr.mxu0 0.0
  %412 = vmatpush1.msra.mxu0 0.0
  %413 = vmatprep.mubr.f32.mxu0 0.0
  %414 = vmatmul.mubr.f32.gmra.mrb[0].mxu0 %v338
  %v415 = vpop.f32.mrb[0].mxu0
  %v416 = vadd.f32 0.0, %v415
  %v417 = vpop.f32.mrb[0].mxu0
  %418 = vmatprep.mubr.f32.mxu0 0.0
  %419 = vmatmul.mubr.f32.gmra.mrb[0].mxu0 %v341
  %v420 = vpop.f32.mrb[0].mxu0
  %v421 = vadd.f32 0.0, %v420
  %v422 = vpop.f32.mrb[0].mxu0
  %423 = vmatprep.mubr.f32.mxu0 0.0
  %424 = vmatmul.mubr.f32.gmra.mrb[0].mxu0 %v344
  %v425 = vpop.f32.mrb[0].mxu0
  %v426 = vadd.f32 0.0, %v425
  %v427 = vpop.f32.mrb[0].mxu0
  %428 = vmatprep.mubr.f32.mxu0 0.0
  %429 = vmatmul.mubr.f32.gmra.mrb[0].mxu0 %v347
  %v430 = vpop.f32.mrb[0].mxu0
  %v431 = vadd.f32 0.0, %v430
  %v432 = vpop.f32.mrb[0].mxu0
  %433 = vdwg.mxu0
  %v434 = vadd.f32 %v306, %v416
  %v435 = vadd.f32 %v311, %v421
  %v436 = vadd.f32 %v316, %v426
  %v437 = vadd.f32 %v321, %v431
  %v438 = vld [vmem:[%s4] sm:$0x1]
  %v439 = vld [vmem:[%s4 + $0x1] sm:$0x1]
  %v440 = vadd.f32 %v434, %v435
  %v441 = vadd.f32 %v440, %v436
  %v442 = vadd.f32 %v441, %v437
  %v443 = vrot.slane %v442, 4
  %v444 = vadd.f32 %v442, %v443
  %v445 = vrot.slane %v444, 2
  %v446 = vadd.f32 %v444, %v445
  %v447 = vrot.slane %v446, 1
  %v448 = vadd.f32 %v446, %v447
  %449 = vmatprep.subr.mxu0 0.0
  %450 = vmatpush1.msra.mxu0 %v88
  %451 = vmatprep.subr.mxu0 0.0
  %452 = vmatpush1.msra.mxu0 %v89
  %453 = vmatprep.subr.mxu0 0.0
  %454 = vmatpush1.msra.mxu0 %v90
  %455 = vmatprep.subr.mxu0 0.0
  %456 = vmatpush1.msra.mxu0 %v91
  %457 = vmatprep.subr.mxu0 0.0
  %458 = vmatpush1.msra.mxu0 %v92
  %459 = vmatprep.subr.mxu0 0.0
  %460 = vmatpush1.msra.mxu0 %v93
  %461 = vmatprep.subr.mxu0 0.0
  %462 = vmatpush1.msra.mxu0 %v94
  %463 = vmatprep.subr.mxu0 0.0
  %464 = vmatpush1.msra.mxu0 %v95
  %465 = vmatprep.subr.mxu0 0.0
  %466 = vmatpush1.msra.mxu0 %v96
  %467 = vmatprep.subr.mxu0 0.0
  %468 = vmatpush1.msra.mxu0 %v97
  %469 = vmatprep.subr.mxu0 0.0
  %470 = vmatpush1.msra.mxu0 %v98
  %471 = vmatprep.subr.mxu0 0.0
  %472 = vmatpush1.msra.mxu0 %v99
  %473 = vmatprep.subr.mxu0 0.0
  %474 = vmatpush1.msra.mxu0 %v100
  %475 = vmatprep.subr.mxu0 0.0
  %476 = vmatpush1.msra.mxu0 %v101
  %477 = vmatprep.subr.mxu0 0.0
  %478 = vmatpush1.msra.mxu0 %v102
  %479 = vmatprep.subr.mxu0 0.0
  %480 = vmatpush1.msra.mxu0 %v103
  %481 = vmatprep.subr.mxu0 0.0
  %482 = vmatpush1.msra.mxu0 0.0
  %483 = vmatprep.subr.mxu0 0.0
  %484 = vmatpush1.msra.mxu0 0.0
  %485 = vmatprep.subr.mxu0 0.0
  %486 = vmatpush1.msra.mxu0 0.0
  %487 = vmatprep.subr.mxu0 0.0
  %488 = vmatpush1.msra.mxu0 0.0
  %489 = vmatprep.subr.mxu0 0.0
  %490 = vmatpush1.msra.mxu0 0.0
  %491 = vmatprep.subr.mxu0 0.0
  %492 = vmatpush1.msra.mxu0 0.0
  %493 = vmatprep.subr.mxu0 0.0
  %494 = vmatpush1.msra.mxu0 0.0
  %495 = vmatprep.subr.mxu0 0.0
  %496 = vmatpush1.msra.mxu0 0.0
  %497 = vmatprep.subr.mxu0 0.0
  %498 = vmatpush1.msra.mxu0 0.0
  %499 = vmatprep.subr.mxu0 0.0
  %500 = vmatpush1.msra.mxu0 0.0
  %501 = vmatprep.subr.mxu0 0.0
  %502 = vmatpush1.msra.mxu0 0.0
  %503 = vmatprep.subr.mxu0 0.0
  %504 = vmatpush1.msra.mxu0 0.0
  %505 = vmatprep.subr.mxu0 0.0
  %506 = vmatpush1.msra.mxu0 0.0
  %507 = vmatprep.subr.mxu0 0.0
  %508 = vmatpush1.msra.mxu0 0.0
  %509 = vmatprep.subr.mxu0 0.0
  %510 = vmatpush1.msra.mxu0 0.0
  %511 = vmatprep.subr.mxu0 0.0
  %512 = vmatpush1.msra.mxu0 0.0
  %513 = vmatprep.mubr.f32.mxu0 0.0
  %514 = vmatmul.mubr.f32.gmra.mrb[0].mxu0 %v448
  %v515 = vpop.f32.mrb[0].mxu0
  %v516 = vadd.f32 0.0, %v515
  %v517 = vpop.f32.mrb[0].mxu0
  %518 = vdwg.mxu0
  %v519 = vmul.f32 %v516, 0.001953125
  %v520 = vlaneseq
  %v521 = vshrl.u32 %v520, 7
  %v522 = vsub.s32 0, %v521
  %v523 = vrot.slane %v519, %v522
  %v524 = vsub.f32 %v434, %v523
  %v525 = vsub.f32 %v435, %v523
  %v526 = vsub.f32 %v436, %v523
  %v527 = vsub.f32 %v437, %v523
  %v528 = vmul.f32 %v524, %v524
  %v529 = vmul.f32 %v525, %v525
  %v530 = vmul.f32 %v526, %v526
  %v531 = vmul.f32 %v527, %v527
  %v532 = vadd.f32 %v528, %v529
  %v533 = vadd.f32 %v532, %v530
  %v534 = vadd.f32 %v533, %v531
  %v535 = vrot.slane %v534, 4
  %v536 = vadd.f32 %v534, %v535
  %v537 = vrot.slane %v536, 2
  %v538 = vadd.f32 %v536, %v537
  %v539 = vrot.slane %v538, 1
  %v540 = vadd.f32 %v538, %v539
  %541 = vmatprep.subr.mxu0 0.0
  %542 = vmatpush1.msra.mxu0 %v88
  %543 = vmatprep.subr.mxu0 0.0
  %544 = vmatpush1.msra.mxu0 %v89
  %545 = vmatprep.subr.mxu0 0.0
  %546 = vmatpush1.msra.mxu0 %v90
  %547 = vmatprep.subr.mxu0 0.0
  %548 = vmatpush1.msra.mxu0 %v91
  %549 = vmatprep.subr.mxu0 0.0
  %550 = vmatpush1.msra.mxu0 %v92
  %551 = vmatprep.subr.mxu0 0.0
  %552 = vmatpush1.msra.mxu0 %v93
  %553 = vmatprep.subr.mxu0 0.0
  %554 = vmatpush1.msra.mxu0 %v94
  %555 = vmatprep.subr.mxu0 0.0
  %556 = vmatpush1.msra.mxu0 %v95
  %557 = vmatprep.subr.mxu0 0.0
  %558 = vmatpush1.msra.mxu0 %v96
  %559 = vmatprep.subr.mxu0 0.0
  %560 = vmatpush1.msra.mxu0 %v97
  %561 = vmatprep.subr.mxu0 0.0
  %562 = vmatpush1.msra.mxu0 %v98
  %563 = vmatprep.subr.mxu0 0.0
  %564 = vmatpush1.msra.mxu0 %v99
  %565 = vmatprep.subr.mxu0 0.0
  %566 = vmatpush1.msra.mxu0 %v100
  %567 = vmatprep.subr.mxu0 0.0
  %568 = vmatpush1.msra.mxu0 %v101
  %569 = vmatprep.subr.mxu0 0.0
  %570 = vmatpush1.msra.mxu0 %v102
  %571 = vmatprep.subr.mxu0 0.0
  %572 = vmatpush1.msra.mxu0 %v103
  %573 = vmatprep.subr.mxu0 0.0
  %574 = vmatpush1.msra.mxu0 0.0
  %575 = vmatprep.subr.mxu0 0.0
  %576 = vmatpush1.msra.mxu0 0.0
  %577 = vmatprep.subr.mxu0 0.0
  %578 = vmatpush1.msra.mxu0 0.0
  %579 = vmatprep.subr.mxu0 0.0
  %580 = vmatpush1.msra.mxu0 0.0
  %581 = vmatprep.subr.mxu0 0.0
  %582 = vmatpush1.msra.mxu0 0.0
  %583 = vmatprep.subr.mxu0 0.0
  %584 = vmatpush1.msra.mxu0 0.0
  %585 = vmatprep.subr.mxu0 0.0
  %586 = vmatpush1.msra.mxu0 0.0
  %587 = vmatprep.subr.mxu0 0.0
  %588 = vmatpush1.msra.mxu0 0.0
  %589 = vmatprep.subr.mxu0 0.0
  %590 = vmatpush1.msra.mxu0 0.0
  %591 = vmatprep.subr.mxu0 0.0
  %592 = vmatpush1.msra.mxu0 0.0
  %593 = vmatprep.subr.mxu0 0.0
  %594 = vmatpush1.msra.mxu0 0.0
  %595 = vmatprep.subr.mxu0 0.0
  %596 = vmatpush1.msra.mxu0 0.0
  %597 = vmatprep.subr.mxu0 0.0
  %598 = vmatpush1.msra.mxu0 0.0
  %599 = vmatprep.subr.mxu0 0.0
  %600 = vmatpush1.msra.mxu0 0.0
  %601 = vmatprep.subr.mxu0 0.0
  %602 = vmatpush1.msra.mxu0 0.0
  %603 = vmatprep.subr.mxu0 0.0
  %604 = vmatpush1.msra.mxu0 0.0
  %605 = vmatprep.mubr.f32.mxu0 0.0
  %606 = vmatmul.mubr.f32.gmra.mrb[0].mxu0 %v540
  %v607 = vpop.f32.mrb[0].mxu0
  %v608 = vadd.f32 0.0, %v607
  %v609 = vpop.f32.mrb[0].mxu0
  %610 = vdwg.mxu0
  %v611 = vmul.f32 %v608, 0.001953125
  %v612 = vadd.f32 %v611, 1e-05
  %v613 = vrsqrt.pop %v612
  %v614 = vmul.f32 %v438, %v613
  %v615 = vlaneseq
  %v616 = vshrl.u32 %v615, 7
  %v617 = vsub.s32 0, %v616
  %v618 = vrot.slane %v614, %v617
  %v619 = vmul.f32 %v524, %v618
  %v620 = vmul.f32 %v525, %v618
  %v621 = vmul.f32 %v526, %v618
  %v622 = vmul.f32 %v527, %v618
  %v623 = vlaneseq
  %v624 = vshrl.u32 %v623, 7
  %v625 = vsub.s32 0, %v624
  %v626 = vrot.slane %v439, %v625
  %v627 = vadd.f32 %v619, %v626
  %v628 = vadd.f32 %v620, %v626
  %v629 = vadd.f32 %v621, %v626
  %v630 = vadd.f32 %v622, %v626
  %vm631 = vcmp.gt.f32.partialorder %v627, 0.0
  %vm632 = vcmp.gt.f32.partialorder %v628, 0.0
  %vm633 = vcmp.gt.f32.partialorder %v629, 0.0
  %vm634 = vcmp.gt.f32.partialorder %v630, 0.0
  %v635 = vmul.f32 %v627, 0.1
  %v636 = vmul.f32 %v628, 0.1
  %v637 = vmul.f32 %v629, 0.1
  %v638 = vmul.f32 %v630, 0.1
  %v639 = vsel %vm631, %v627, %v635
  %v640 = vsel %vm632, %v628, %v636
  %v641 = vsel %vm633, %v629, %v637
  %v642 = vsel %vm634, %v630, %v638
  %643 = vst [vmem:[#allocation2] sm:$0x1] 0.0
  %644 = vst [vmem:[#allocation2 + $0x18] sm:$0x1] 0.0
  %645 = vst [vmem:[#allocation2 + $0x11] sm:$0x1] 0.0
  %646 = vst [vmem:[#allocation2 + $0x29] sm:$0x1] 0.0
  %647 = vst [vmem:[#allocation2 + $0x1] sm:$0xff] %v639
  %648 = vst [vmem:[#allocation2 + $0x9] sm:$0xff] %v640
  %649 = vst [vmem:[#allocation2 + $0x19] sm:$0xff] %v641
  %650 = vst [vmem:[#allocation2 + $0x21] sm:$0xff] %v642
  %v651 = vld [vmem:[#allocation2] sm:$0xff]
  %v652 = vld [vmem:[#allocation2 + $0x8] sm:$0xff]
  %v653 = vld [vmem:[#allocation2 + $0x18] sm:$0xff]
  %v654 = vld [vmem:[#allocation2 + $0x20] sm:$0xff]
  %v655 = vld [vmem:[%s2] sm:$0xff]
  %v656 = vld [vmem:[%s2 + $0x8] sm:$0xff]
  %v657 = vld [vmem:[%s2 + $0x10] sm:$0xff]
  %v658 = vld [vmem:[%s2 + $0x18] sm:$0xff]
  %v659 = vld [vmem:[%s2 + $0x20] sm:$0xff]
  %v660 = vld [vmem:[%s2 + $0x28] sm:$0xff]
  %v661 = vld [vmem:[%s2 + $0x30] sm:$0xff]
  %v662 = vld [vmem:[%s2 + $0x38] sm:$0xff]
  %v663 = vld [vmem:[%s2 + $0x40] sm:$0xff]
  %v664 = vld [vmem:[%s2 + $0x48] sm:$0xff]
  %v665 = vld [vmem:[%s2 + $0x50] sm:$0xff]
  %v666 = vld [vmem:[%s2 + $0x58] sm:$0xff]
  %v667 = vld [vmem:[%s2 + $0x60] sm:$0xff]
  %v668 = vld [vmem:[%s2 + $0x68] sm:$0xff]
  %v669 = vld [vmem:[%s2 + $0x70] sm:$0xff]
  %v670 = vld [vmem:[%s2 + $0x78] sm:$0xff]
  %v671 = vld [vmem:[#allocation2 + $0x1] sm:$0xff]
  %v672 = vld [vmem:[#allocation2 + $0x9] sm:$0xff]
  %v673 = vld [vmem:[#allocation2 + $0x19] sm:$0xff]
  %v674 = vld [vmem:[#allocation2 + $0x21] sm:$0xff]
  %s675 = scalar_lea.vmem %s2, 128
  %v676 = vld [vmem:[%s675] sm:$0xff]
  %v677 = vld [vmem:[%s675 + $0x8] sm:$0xff]
  %v678 = vld [vmem:[%s675 + $0x10] sm:$0xff]
  %v679 = vld [vmem:[%s675 + $0x18] sm:$0xff]
  %v680 = vld [vmem:[%s675 + $0x20] sm:$0xff]
  %v681 = vld [vmem:[%s675 + $0x28] sm:$0xff]
  %v682 = vld [vmem:[%s675 + $0x30] sm:$0xff]
  %v683 = vld [vmem:[%s675 + $0x38] sm:$0xff]
  %v684 = vld [vmem:[%s675 + $0x40] sm:$0xff]
  %v685 = vld [vmem:[%s675 + $0x48] sm:$0xff]
  %v686 = vld [vmem:[%s675 + $0x50] sm:$0xff]
  %v687 = vld [vmem:[%s675 + $0x58] sm:$0xff]
  %v688 = vld [vmem:[%s675 + $0x60] sm:$0xff]
  %v689 = vld [vmem:[%s675 + $0x68] sm:$0xff]
  %v690 = vld [vmem:[%s675 + $0x70] sm:$0xff]
  %v691 = vld [vmem:[%s675 + $0x78] sm:$0xff]
  %692 = vmatprep.subr.mxu0 0.0
  %693 = vmatpush1.msra.mxu0 %v676
  %694 = vmatprep.subr.mxu0 0.0
  %695 = vmatpush1.msra.mxu0 %v677
  %696 = vmatprep.subr.mxu0 0.0
  %697 = vmatpush1.msra.mxu0 %v678
  %698 = vmatprep.subr.mxu0 0.0
  %699 = vmatpush1.msra.mxu0 %v679
  %700 = vmatprep.subr.mxu0 0.0
  %701 = vmatpush1.msra.mxu0 %v680
  %702 = vmatprep.subr.mxu0 0.0
  %703 = vmatpush1.msra.mxu0 %v681
  %704 = vmatprep.subr.mxu0 0.0
  %705 = vmatpush1.msra.mxu0 %v682
  %706 = vmatprep.subr.mxu0 0.0
  %707 = vmatpush1.msra.mxu0 %v683
  %708 = vmatprep.subr.mxu0 0.0
  %709 = vmatpush1.msra.mxu0 %v684
  %710 = vmatprep.subr.mxu0 0.0
  %711 = vmatpush1.msra.mxu0 %v685
  %712 = vmatprep.subr.mxu0 0.0
  %713 = vmatpush1.msra.mxu0 %v686
  %714 = vmatprep.subr.mxu0 0.0
  %715 = vmatpush1.msra.mxu0 %v687
  %716 = vmatprep.subr.mxu0 0.0
  %717 = vmatpush1.msra.mxu0 %v688
  %718 = vmatprep.subr.mxu0 0.0
  %719 = vmatpush1.msra.mxu0 %v689
  %720 = vmatprep.subr.mxu0 0.0
  %721 = vmatpush1.msra.mxu0 %v690
  %722 = vmatprep.subr.mxu0 0.0
  %723 = vmatpush1.msra.mxu0 %v691
  %724 = vmatprep.subr.mxu0 0.0
  %725 = vmatpush1.msra.mxu0 0.0
  %726 = vmatprep.subr.mxu0 0.0
  %727 = vmatpush1.msra.mxu0 0.0
  %728 = vmatprep.subr.mxu0 0.0
  %729 = vmatpush1.msra.mxu0 0.0
  %730 = vmatprep.subr.mxu0 0.0
  %731 = vmatpush1.msra.mxu0 0.0
  %732 = vmatprep.subr.mxu0 0.0
  %733 = vmatpush1.msra.mxu0 0.0
  %734 = vmatprep.subr.mxu0 0.0
  %735 = vmatpush1.msra.mxu0 0.0
  %736 = vmatprep.subr.mxu0 0.0
  %737 = vmatpush1.msra.mxu0 0.0
  %738 = vmatprep.subr.mxu0 0.0
  %739 = vmatpush1.msra.mxu0 0.0
  %740 = vmatprep.subr.mxu0 0.0
  %741 = vmatpush1.msra.mxu0 0.0
  %742 = vmatprep.subr.mxu0 0.0
  %743 = vmatpush1.msra.mxu0 0.0
  %744 = vmatprep.subr.mxu0 0.0
  %745 = vmatpush1.msra.mxu0 0.0
  %746 = vmatprep.subr.mxu0 0.0
  %747 = vmatpush1.msra.mxu0 0.0
  %748 = vmatprep.subr.mxu0 0.0
  %749 = vmatpush1.msra.mxu0 0.0
  %750 = vmatprep.subr.mxu0 0.0
  %751 = vmatpush1.msra.mxu0 0.0
  %752 = vmatprep.subr.mxu0 0.0
  %753 = vmatpush1.msra.mxu0 0.0
  %754 = vmatprep.subr.mxu0 0.0
  %755 = vmatpush1.msra.mxu0 0.0
  %756 = vmatprep.mubr.f32.mxu0 0.0
  %757 = vmatmul.mubr.f32.gmra.mrb[0].mxu0 %v671
  %v758 = vpop.f32.mrb[0].mxu0
  %v759 = vadd.f32 0.0, %v758
  %v760 = vpop.f32.mrb[0].mxu0
  %761 = vmatprep.mubr.f32.mxu0 0.0
  %762 = vmatmul.mubr.f32.gmra.mrb[0].mxu0 %v672
  %v763 = vpop.f32.mrb[0].mxu0
  %v764 = vadd.f32 0.0, %v763
  %v765 = vpop.f32.mrb[0].mxu0
  %766 = vmatprep.mubr.f32.mxu0 0.0
  %767 = vmatmul.mubr.f32.gmra.mrb[0].mxu0 %v673
  %v768 = vpop.f32.mrb[0].mxu0
  %v769 = vadd.f32 0.0, %v768
  %v770 = vpop.f32.mrb[0].mxu0
  %771 = vmatprep.mubr.f32.mxu0 0.0
  %772 = vmatmul.mubr.f32.gmra.mrb[0].mxu0 %v674
  %v773 = vpop.f32.mrb[0].mxu0
  %v774 = vadd.f32 0.0, %v773
  %v775 = vpop.f32.mrb[0].mxu0
  %776 = vdwg.mxu0
  %777 = vmatprep.subr.mxu0 0.0
  %778 = vmatpush1.msra.mxu0 %v655
  %779 = vmatprep.subr.mxu0 0.0
  %780 = vmatpush1.msra.mxu0 %v656
  %781 = vmatprep.subr.mxu0 0.0
  %782 = vmatpush1.msra.mxu0 %v657
  %783 = vmatprep.subr.mxu0 0.0
  %784 = vmatpush1.msra.mxu0 %v658
  %785 = vmatprep.subr.mxu0 0.0
  %786 = vmatpush1.msra.mxu0 %v659
  %787 = vmatprep.subr.mxu0 0.0
  %788 = vmatpush1.msra.mxu0 %v660
  %789 = vmatprep.subr.mxu0 0.0
  %790 = vmatpush1.msra.mxu0 %v661
  %791 = vmatprep.subr.mxu0 0.0
  %792 = vmatpush1.msra.mxu0 %v662
  %793 = vmatprep.subr.mxu0 0.0
  %794 = vmatpush1.msra.mxu0 %v663
  %795 = vmatprep.subr.mxu0 0.0
  %796 = vmatpush1.msra.mxu0 %v664
  %797 = vmatprep.subr.mxu0 0.0
  %798 = vmatpush1.msra.mxu0 %v665
  %799 = vmatprep.subr.mxu0 0.0
  %800 = vmatpush1.msra.mxu0 %v666
  %801 = vmatprep.subr.mxu0 0.0
  %802 = vmatpush1.msra.mxu0 %v667
  %803 = vmatprep.subr.mxu0 0.0
  %804 = vmatpush1.msra.mxu0 %v668
  %805 = vmatprep.subr.mxu0 0.0
  %806 = vmatpush1.msra.mxu0 %v669
  %807 = vmatprep.subr.mxu0 0.0
  %808 = vmatpush1.msra.mxu0 %v670
  %809 = vmatprep.subr.mxu0 0.0
  %810 = vmatpush1.msra.mxu0 0.0
  %811 = vmatprep.subr.mxu0 0.0
  %812 = vmatpush1.msra.mxu0 0.0
  %813 = vmatprep.subr.mxu0 0.0
  %814 = vmatpush1.msra.mxu0 0.0
  %815 = vmatprep.subr.mxu0 0.0
  %816 = vmatpush1.msra.mxu0 0.0
  %817 = vmatprep.subr.mxu0 0.0
  %818 = vmatpush1.msra.mxu0 0.0
  %819 = vmatprep.subr.mxu0 0.0
  %820 = vmatpush1.msra.mxu0 0.0
  %821 = vmatprep.subr.mxu0 0.0
  %822 = vmatpush1.msra.mxu0 0.0
  %823 = vmatprep.subr.mxu0 0.0
  %824 = vmatpush1.msra.mxu0 0.0
  %825 = vmatprep.subr.mxu0 0.0
  %826 = vmatpush1.msra.mxu0 0.0
  %827 = vmatprep.subr.mxu0 0.0
  %828 = vmatpush1.msra.mxu0 0.0
  %829 = vmatprep.subr.mxu0 0.0
  %830 = vmatpush1.msra.mxu0 0.0
  %831 = vmatprep.subr.mxu0 0.0
  %832 = vmatpush1.msra.mxu0 0.0
  %833 = vmatprep.subr.mxu0 0.0
  %834 = vmatpush1.msra.mxu0 0.0
  %835 = vmatprep.subr.mxu0 0.0
  %836 = vmatpush1.msra.mxu0 0.0
  %837 = vmatprep.subr.mxu0 0.0
  %838 = vmatpush1.msra.mxu0 0.0
  %839 = vmatprep.subr.mxu0 0.0
  %840 = vmatpush1.msra.mxu0 0.0
  %841 = vmatprep.mubr.f32.mxu0 0.0
  %842 = vmatmul.mubr.f32.gmra.mrb[0].mxu0 %v651
  %v843 = vpop.f32.mrb[0].mxu0
  %v844 = vadd.f32 %v759, %v843
  %v845 = vpop.f32.mrb[0].mxu0
  %846 = vmatprep.mubr.f32.mxu0 0.0
  %847 = vmatmul.mubr.f32.gmra.mrb[0].mxu0 %v652
  %v848 = vpop.f32.mrb[0].mxu0
  %v849 = vadd.f32 %v764, %v848
  %v850 = vpop.f32.mrb[0].mxu0
  %851 = vmatprep.mubr.f32.mxu0 0.0
  %852 = vmatmul.mubr.f32.gmra.mrb[0].mxu0 %v653
  %v853 = vpop.f32.mrb[0].mxu0
  %v854 = vadd.f32 %v769, %v853
  %v855 = vpop.f32.mrb[0].mxu0
  %856 = vmatprep.mubr.f32.mxu0 0.0
  %857 = vmatmul.mubr.f32.gmra.mrb[0].mxu0 %v654
  %v858 = vpop.f32.mrb[0].mxu0
  %v859 = vadd.f32 %v774, %v858
  %v860 = vpop.f32.mrb[0].mxu0
  %861 = vdwg.mxu0
  %v862 = vld [vmem:[#allocation2 + $0x2] sm:$0xff]
  %v863 = vld [vmem:[#allocation2 + $0xa] sm:$0xff]
  %v864 = vld [vmem:[#allocation2 + $0x1a] sm:$0xff]
  %v865 = vld [vmem:[#allocation2 + $0x22] sm:$0xff]
  %s866 = scalar_lea.vmem %s2, 256
  %v867 = vld [vmem:[%s866] sm:$0xff]
  %v868 = vld [vmem:[%s866 + $0x8] sm:$0xff]
  %v869 = vld [vmem:[%s866 + $0x10] sm:$0xff]
  %v870 = vld [vmem:[%s866 + $0x18] sm:$0xff]
  %v871 = vld [vmem:[%s866 + $0x20] sm:$0xff]
  %v872 = vld [vmem:[%s866 + $0x28] sm:$0xff]
  %v873 = vld [vmem:[%s866 + $0x30] sm:$0xff]
  %v874 = vld [vmem:[%s866 + $0x38] sm:$0xff]
  %v875 = vld [vmem:[%s866 + $0x40] sm:$0xff]
  %v876 = vld [vmem:[%s866 + $0x48] sm:$0xff]
  %v877 = vld [vmem:[%s866 + $0x50] sm:$0xff]
  %v878 = vld [vmem:[%s866 + $0x58] sm:$0xff]
  %v879 = vld [vmem:[%s866 + $0x60] sm:$0xff]
  %v880 = vld [vmem:[%s866 + $0x68] sm:$0xff]
  %v881 = vld [vmem:[%s866 + $0x70] sm:$0xff]
  %v882 = vld [vmem:[%s866 + $0x78] sm:$0xff]
  %883 = vmatprep.subr.mxu0 0.0
  %884 = vmatpush1.msra.mxu0 %v867
  %885 = vmatprep.subr.mxu0 0.0
  %886 = vmatpush1.msra.mxu0 %v868
  %887 = vmatprep.subr.mxu0 0.0
  %888 = vmatpush1.msra.mxu0 %v869
  %889 = vmatprep.subr.mxu0 0.0
  %890 = vmatpush1.msra.mxu0 %v870
  %891 = vmatprep.subr.mxu0 0.0
  %892 = vmatpush1.msra.mxu0 %v871
  %893 = vmatprep.subr.mxu0 0.0
  %894 = vmatpush1.msra.mxu0 %v872
  %895 = vmatprep.subr.mxu0 0.0
  %896 = vmatpush1.msra.mxu0 %v873
  %897 = vmatprep.subr.mxu0 0.0
  %898 = vmatpush1.msra.mxu0 %v874
  %899 = vmatprep.subr.mxu0 0.0
  %900 = vmatpush1.msra.mxu0 %v875
  %901 = vmatprep.subr.mxu0 0.0
  %902 = vmatpush1.msra.mxu0 %v876
  %903 = vmatprep.subr.mxu0 0.0
  %904 = vmatpush1.msra.mxu0 %v877
  %905 = vmatprep.subr.mxu0 0.0
  %906 = vmatpush1.msra.mxu0 %v878
  %907 = vmatprep.subr.mxu0 0.0
  %908 = vmatpush1.msra.mxu0 %v879
  %909 = vmatprep.subr.mxu0 0.0
  %910 = vmatpush1.msra.mxu0 %v880
  %911 = vmatprep.subr.mxu0 0.0
  %912 = vmatpush1.msra.mxu0 %v881
  %913 = vmatprep.subr.mxu0 0.0
  %914 = vmatpush1.msra.mxu0 %v882
  %915 = vmatprep.subr.mxu0 0.0
  %916 = vmatpush1.msra.mxu0 0.0
  %917 = vmatprep.subr.mxu0 0.0
  %918 = vmatpush1.msra.mxu0 0.0
  %919 = vmatprep.subr.mxu0 0.0
  %920 = vmatpush1.msra.mxu0 0.0
  %921 = vmatprep.subr.mxu0 0.0
  %922 = vmatpush1.msra.mxu0 0.0
  %923 = vmatprep.subr.mxu0 0.0
  %924 = vmatpush1.msra.mxu0 0.0
  %925 = vmatprep.subr.mxu0 0.0
  %926 = vmatpush1.msra.mxu0 0.0
  %927 = vmatprep.subr.mxu0 0.0
  %928 = vmatpush1.msra.mxu0 0.0
  %929 = vmatprep.subr.mxu0 0.0
  %930 = vmatpush1.msra.mxu0 0.0
  %931 = vmatprep.subr.mxu0 0.0
  %932 = vmatpush1.msra.mxu0 0.0
  %933 = vmatprep.subr.mxu0 0.0
  %934 = vmatpush1.msra.mxu0 0.0
  %935 = vmatprep.subr.mxu0 0.0
  %936 = vmatpush1.msra.mxu0 0.0
  %937 = vmatprep.subr.mxu0 0.0
  %938 = vmatpush1.msra.mxu0 0.0
  %939 = vmatprep.subr.mxu0 0.0
  %940 = vmatpush1.msra.mxu0 0.0
  %941 = vmatprep.subr.mxu0 0.0
  %942 = vmatpush1.msra.mxu0 0.0
  %943 = vmatprep.subr.mxu0 0.0
  %944 = vmatpush1.msra.mxu0 0.0
  %945 = vmatprep.subr.mxu0 0.0
  %946 = vmatpush1.msra.mxu0 0.0
  %947 = vmatprep.mubr.f32.mxu0 0.0
  %948 = vmatmul.mubr.f32.gmra.mrb[0].mxu0 %v862
  %v949 = vpop.f32.mrb[0].mxu0
  %v950 = vadd.f32 0.0, %v949
  %v951 = vpop.f32.mrb[0].mxu0
  %952 = vmatprep.mubr.f32.mxu0 0.0
  %953 = vmatmul.mubr.f32.gmra.mrb[0].mxu0 %v863
  %v954 = vpop.f32.mrb[0].mxu0
  %v955 = vadd.f32 0.0, %v954
  %v956 = vpop.f32.mrb[0].mxu0
  %957 = vmatprep.mubr.f32.mxu0 0.0
  %958 = vmatmul.mubr.f32.gmra.mrb[0].mxu0 %v864
  %v959 = vpop.f32.mrb[0].mxu0
  %v960 = vadd.f32 0.0, %v959
  %v961 = vpop.f32.mrb[0].mxu0
  %962 = vmatprep.mubr.f32.mxu0 0.0
  %963 = vmatmul.mubr.f32.gmra.mrb[0].mxu0 %v865
  %v964 = vpop.f32.mrb[0].mxu0
  %v965 = vadd.f32 0.0, %v964
  %v966 = vpop.f32.mrb[0].mxu0
  %967 = vdwg.mxu0
  %v968 = vadd.f32 %v844, %v950
  %v969 = vadd.f32 %v849, %v955
  %v970 = vadd.f32 %v854, %v960
  %v971 = vadd.f32 %v859, %v965
  %v972 = vld [vmem:[%s4 + $0x2] sm:$0x1]
  %v973 = vld [vmem:[%s4 + $0x3] sm:$0x1]
  %v974 = vadd.f32 %v968, %v969
  %v975 = vadd.f32 %v974, %v970
  %v976 = vadd.f32 %v975, %v971
  %v977 = vrot.slane %v976, 4
  %v978 = vadd.f32 %v976, %v977
  %v979 = vrot.slane %v978, 2
  %v980 = vadd.f32 %v978, %v979
  %v981 = vrot.slane %v980, 1
  %v982 = vadd.f32 %v980, %v981
  %983 = vmatprep.subr.mxu0 0.0
  %984 = vmatpush1.msra.mxu0 %v88
  %985 = vmatprep.subr.mxu0 0.0
  %986 = vmatpush1.msra.mxu0 %v89
  %987 = vmatprep.subr.mxu0 0.0
  %988 = vmatpush1.msra.mxu0 %v90
  %989 = vmatprep.subr.mxu0 0.0
  %990 = vmatpush1.msra.mxu0 %v91
  %991 = vmatprep.subr.mxu0 0.0
  %992 = vmatpush1.msra.mxu0 %v92
  %993 = vmatprep.subr.mxu0 0.0
  %994 = vmatpush1.msra.mxu0 %v93
  %995 = vmatprep.subr.mxu0 0.0
  %996 = vmatpush1.msra.mxu0 %v94
  %997 = vmatprep.subr.mxu0 0.0
  %998 = vmatpush1.msra.mxu0 %v95
  %999 = vmatprep.subr.mxu0 0.0
  %1000 = vmatpush1.msra.mxu0 %v96
  %1001 = vmatprep.subr.mxu0 0.0
  %1002 = vmatpush1.msra.mxu0 %v97
  %1003 = vmatprep.subr.mxu0 0.0
  %1004 = vmatpush1.msra.mxu0 %v98
  %1005 = vmatprep.subr.mxu0 0.0
  %1006 = vmatpush1.msra.mxu0 %v99
  %1007 = vmatprep.subr.mxu0 0.0
  %1008 = vmatpush1.msra.mxu0 %v100
  %1009 = vmatprep.subr.mxu0 0.0
  %1010 = vmatpush1.msra.mxu0 %v101
  %1011 = vmatprep.subr.mxu0 0.0
  %1012 = vmatpush1.msra.mxu0 %v102
  %1013 = vmatprep.subr.mxu0 0.0
  %1014 = vmatpush1.msra.mxu0 %v103
  %1015 = vmatprep.subr.mxu0 0.0
  %1016 = vmatpush1.msra.mxu0 0.0
  %1017 = vmatprep.subr.mxu0 0.0
  %1018 = vmatpush1.msra.mxu0 0.0
  %1019 = vmatprep.subr.mxu0 0.0
  %1020 = vmatpush1.msra.mxu0 0.0
  %1021 = vmatprep.subr.mxu0 0.0
  %1022 = vmatpush1.msra.mxu0 0.0
  %1023 = vmatprep.subr.mxu0 0.0
  %1024 = vmatpush1.msra.mxu0 0.0
  %1025 = vmatprep.subr.mxu0 0.0
  %1026 = vmatpush1.msra.mxu0 0.0
  %1027 = vmatprep.subr.mxu0 0.0
  %1028 = vmatpush1.msra.mxu0 0.0
  %1029 = vmatprep.subr.mxu0 0.0
  %1030 = vmatpush1.msra.mxu0 0.0
  %1031 = vmatprep.subr.mxu0 0.0
  %1032 = vmatpush1.msra.mxu0 0.0
  %1033 = vmatprep.subr.mxu0 0.0
  %1034 = vmatpush1.msra.mxu0 0.0
  %1035 = vmatprep.subr.mxu0 0.0
  %1036 = vmatpush1.msra.mxu0 0.0
  %1037 = vmatprep.subr.mxu0 0.0
  %1038 = vmatpush1.msra.mxu0 0.0
  %1039 = vmatprep.subr.mxu0 0.0
  %1040 = vmatpush1.msra.mxu0 0.0
  %1041 = vmatprep.subr.mxu0 0.0
  %1042 = vmatpush1.msra.mxu0 0.0
  %1043 = vmatprep.subr.mxu0 0.0
  %1044 = vmatpush1.msra.mxu0 0.0
  %1045 = vmatprep.subr.mxu0 0.0
  %1046 = vmatpush1.msra.mxu0 0.0
  %1047 = vmatprep.mubr.f32.mxu0 0.0
  %1048 = vmatmul.mubr.f32.gmra.mrb[0].mxu0 %v982
  %v1049 = vpop.f32.mrb[0].mxu0
  %v1050 = vadd.f32 0.0, %v1049
  %v1051 = vpop.f32.mrb[0].mxu0
  %1052 = vdwg.mxu0
  %v1053 = vmul.f32 %v1050, 0.001953125
  %v1054 = vlaneseq
  %v1055 = vshrl.u32 %v1054, 7
  %v1056 = vsub.s32 0, %v1055
  %v1057 = vrot.slane %v1053, %v1056
  %v1058 = vsub.f32 %v968, %v1057
  %v1059 = vsub.f32 %v969, %v1057
  %v1060 = vsub.f32 %v970, %v1057
  %v1061 = vsub.f32 %v971, %v1057
  %v1062 = vmul.f32 %v1058, %v1058
  %v1063 = vmul.f32 %v1059, %v1059
  %v1064 = vmul.f32 %v1060, %v1060
  %v1065 = vmul.f32 %v1061, %v1061
  %v1066 = vadd.f32 %v1062, %v1063
  %v1067 = vadd.f32 %v1066, %v1064
  %v1068 = vadd.f32 %v1067, %v1065
  %v1069 = vrot.slane %v1068, 4
  %v1070 = vadd.f32 %v1068, %v1069
  %v1071 = vrot.slane %v1070, 2
  %v1072 = vadd.f32 %v1070, %v1071
  %v1073 = vrot.slane %v1072, 1
  %v1074 = vadd.f32 %v1072, %v1073
  %1075 = vmatprep.subr.mxu0 0.0
  %1076 = vmatpush1.msra.mxu0 %v88
  %1077 = vmatprep.subr.mxu0 0.0
  %1078 = vmatpush1.msra.mxu0 %v89
  %1079 = vmatprep.subr.mxu0 0.0
  %1080 = vmatpush1.msra.mxu0 %v90
  %1081 = vmatprep.subr.mxu0 0.0
  %1082 = vmatpush1.msra.mxu0 %v91
  %1083 = vmatprep.subr.mxu0 0.0
  %1084 = vmatpush1.msra.mxu0 %v92
  %1085 = vmatprep.subr.mxu0 0.0
  %1086 = vmatpush1.msra.mxu0 %v93
  %1087 = vmatprep.subr.mxu0 0.0
  %1088 = vmatpush1.msra.mxu0 %v94
  %1089 = vmatprep.subr.mxu0 0.0
  %1090 = vmatpush1.msra.mxu0 %v95
  %1091 = vmatprep.subr.mxu0 0.0
  %1092 = vmatpush1.msra.mxu0 %v96
  %1093 = vmatprep.subr.mxu0 0.0
  %1094 = vmatpush1.msra.mxu0 %v97
  %1095 = vmatprep.subr.mxu0 0.0
  %1096 = vmatpush1.msra.mxu0 %v98
  %1097 = vmatprep.subr.mxu0 0.0
  %1098 = vmatpush1.msra.mxu0 %v99
  %1099 = vmatprep.subr.mxu0 0.0
  %1100 = vmatpush1.msra.mxu0 %v100
  %1101 = vmatprep.subr.mxu0 0.0
  %1102 = vmatpush1.msra.mxu0 %v101
  %1103 = vmatprep.subr.mxu0 0.0
  %1104 = vmatpush1.msra.mxu0 %v102
  %1105 = vmatprep.subr.mxu0 0.0
  %1106 = vmatpush1.msra.mxu0 %v103
  %1107 = vmatprep.subr.mxu0 0.0
  %1108 = vmatpush1.msra.mxu0 0.0
  %1109 = vmatprep.subr.mxu0 0.0
  %1110 = vmatpush1.msra.mxu0 0.0
  %1111 = vmatprep.subr.mxu0 0.0
  %1112 = vmatpush1.msra.mxu0 0.0
  %1113 = vmatprep.subr.mxu0 0.0
  %1114 = vmatpush1.msra.mxu0 0.0
  %1115 = vmatprep.subr.mxu0 0.0
  %1116 = vmatpush1.msra.mxu0 0.0
  %1117 = vmatprep.subr.mxu0 0.0
  %1118 = vmatpush1.msra.mxu0 0.0
  %1119 = vmatprep.subr.mxu0 0.0
  %1120 = vmatpush1.msra.mxu0 0.0
  %1121 = vmatprep.subr.mxu0 0.0
  %1122 = vmatpush1.msra.mxu0 0.0
  %1123 = vmatprep.subr.mxu0 0.0
  %1124 = vmatpush1.msra.mxu0 0.0
  %1125 = vmatprep.subr.mxu0 0.0
  %1126 = vmatpush1.msra.mxu0 0.0
  %1127 = vmatprep.subr.mxu0 0.0
  %1128 = vmatpush1.msra.mxu0 0.0
  %1129 = vmatprep.subr.mxu0 0.0
  %1130 = vmatpush1.msra.mxu0 0.0
  %1131 = vmatprep.subr.mxu0 0.0
  %1132 = vmatpush1.msra.mxu0 0.0
  %1133 = vmatprep.subr.mxu0 0.0
  %1134 = vmatpush1.msra.mxu0 0.0
  %1135 = vmatprep.subr.mxu0 0.0
  %1136 = vmatpush1.msra.mxu0 0.0
  %1137 = vmatprep.subr.mxu0 0.0
  %1138 = vmatpush1.msra.mxu0 0.0
  %1139 = vmatprep.mubr.f32.mxu0 0.0
  %1140 = vmatmul.mubr.f32.gmra.mrb[0].mxu0 %v1074
  %v1141 = vpop.f32.mrb[0].mxu0
  %v1142 = vadd.f32 0.0, %v1141
  %v1143 = vpop.f32.mrb[0].mxu0
  %1144 = vdwg.mxu0
  %v1145 = vmul.f32 %v1142, 0.001953125
  %v1146 = vadd.f32 %v1145, 1e-05
  %v1147 = vrsqrt.pop %v1146
  %v1148 = vmul.f32 %v972, %v1147
  %v1149 = vlaneseq
  %v1150 = vshrl.u32 %v1149, 7
  %v1151 = vsub.s32 0, %v1150
  %v1152 = vrot.slane %v1148, %v1151
  %v1153 = vmul.f32 %v1058, %v1152
  %v1154 = vmul.f32 %v1059, %v1152
  %v1155 = vmul.f32 %v1060, %v1152
  %v1156 = vmul.f32 %v1061, %v1152
  %v1157 = vlaneseq
  %v1158 = vshrl.u32 %v1157, 7
  %v1159 = vsub.s32 0, %v1158
  %v1160 = vrot.slane %v973, %v1159
  %v1161 = vadd.f32 %v1153, %v1160
  %v1162 = vadd.f32 %v1154, %v1160
  %v1163 = vadd.f32 %v1155, %v1160
  %v1164 = vadd.f32 %v1156, %v1160
  %v1165 = vld [vmem:[%s0 + $0x1] sm:$0xff]
  %v1166 = vld [vmem:[%s0 + $0x9] sm:$0xff]
  %v1167 = vld [vmem:[%s0 + $0x19] sm:$0xff]
  %v1168 = vld [vmem:[%s0 + $0x21] sm:$0xff]
  %v1169 = vld [vmem:[%s3] sm:$0xff]
  %v1170 = vld [vmem:[%s3 + $0x8] sm:$0xff]
  %v1171 = vld [vmem:[%s3 + $0x10] sm:$0xff]
  %v1172 = vld [vmem:[%s3 + $0x18] sm:$0xff]
  %v1173 = vld [vmem:[%s3 + $0x20] sm:$0xff]
  %v1174 = vld [vmem:[%s3 + $0x28] sm:$0xff]
  %v1175 = vld [vmem:[%s3 + $0x30] sm:$0xff]
  %v1176 = vld [vmem:[%s3 + $0x38] sm:$0xff]
  %v1177 = vld [vmem:[%s4 + $0x4] sm:$0x1]
  %v1178 = vlaneseq
  %v1179 = vshrl.u32 %v1178, 7
  %v1180 = vsub.s32 0, %v1179
  %v1181 = vrot.slane %v1177, %v1180
  %v1183 = vsel %vm129, %v1165, 0
  %v1186 = vsel %vm129, %v1166, 0
  %v1189 = vsel %vm129, %v1167, 0
  %v1192 = vsel %vm129, %v1168, 0
  %1194 = vmatprep.subr.mxu0 0.0
  %1195 = vmatpush1.msra.mxu0 %v1169
  %1196 = vmatprep.subr.mxu0 0.0
  %1197 = vmatpush1.msra.mxu0 %v1170
  %1198 = vmatprep.subr.mxu0 0.0
  %1199 = vmatpush1.msra.mxu0 %v1171
  %1200 = vmatprep.subr.mxu0 0.0
  %1201 = vmatpush1.msra.mxu0 %v1172
  %1202 = vmatprep.subr.mxu0 0.0
  %1203 = vmatpush1.msra.mxu0 %v1173
  %1204 = vmatprep.subr.mxu0 0.0
  %1205 = vmatpush1.msra.mxu0 %v1174
  %1206 = vmatprep.subr.mxu0 0.0
  %1207 = vmatpush1.msra.mxu0 %v1175
  %1208 = vmatprep.subr.mxu0 0.0
  %1209 = vmatpush1.msra.mxu0 %v1176
  %1210 = vmatprep.subr.mxu0 0.0
  %1211 = vmatpush1.msra.mxu0 0.0
  %1212 = vmatprep.subr.mxu0 0.0
  %1213 = vmatpush1.msra.mxu0 0.0
  %1214 = vmatprep.subr.mxu0 0.0
  %1215 = vmatpush1.msra.mxu0 0.0
  %1216 = vmatprep.subr.mxu0 0.0
  %1217 = vmatpush1.msra.mxu0 0.0
  %1218 = vmatprep.subr.mxu0 0.0
  %1219 = vmatpush1.msra.mxu0 0.0
  %1220 = vmatprep.subr.mxu0 0.0
  %1221 = vmatpush1.msra.mxu0 0.0
  %1222 = vmatprep.subr.mxu0 0.0
  %1223 = vmatpush1.msra.mxu0 0.0
  %1224 = vmatprep.subr.mxu0 0.0
  %1225 = vmatpush1.msra.mxu0 0.0
  %1226 = vmatprep.subr.mxu0 0.0
  %1227 = vmatpush1.msra.mxu0 0.0
  %1228 = vmatprep.subr.mxu0 0.0
  %1229 = vmatpush1.msra.mxu0 0.0
  %1230 = vmatprep.subr.mxu0 0.0
  %1231 = vmatpush1.msra.mxu0 0.0
  %1232 = vmatprep.subr.mxu0 0.0
  %1233 = vmatpush1.msra.mxu0 0.0
  %1234 = vmatprep.subr.mxu0 0.0
  %1235 = vmatpush1.msra.mxu0 0.0
  %1236 = vmatprep.subr.mxu0 0.0
  %1237 = vmatpush1.msra.mxu0 0.0
  %1238 = vmatprep.subr.mxu0 0.0
  %1239 = vmatpush1.msra.mxu0 0.0
  %1240 = vmatprep.subr.mxu0 0.0
  %1241 = vmatpush1.msra.mxu0 0.0
  %1242 = vmatprep.subr.mxu0 0.0
  %1243 = vmatpush1.msra.mxu0 0.0
  %1244 = vmatprep.subr.mxu0 0.0
  %1245 = vmatpush1.msra.mxu0 0.0
  %1246 = vmatprep.subr.mxu0 0.0
  %1247 = vmatpush1.msra.mxu0 0.0
  %1248 = vmatprep.subr.mxu0 0.0
  %1249 = vmatpush1.msra.mxu0 0.0
  %1250 = vmatprep.subr.mxu0 0.0
  %1251 = vmatpush1.msra.mxu0 0.0
  %1252 = vmatprep.subr.mxu0 0.0
  %1253 = vmatpush1.msra.mxu0 0.0
  %1254 = vmatprep.subr.mxu0 0.0
  %1255 = vmatpush1.msra.mxu0 0.0
  %1256 = vmatprep.subr.mxu0 0.0
  %1257 = vmatpush1.msra.mxu0 0.0
  %1258 = vmatprep.mubr.f32.mxu0 0.0
  %1259 = vmatmul.mubr.f32.gmra.mrb[0].mxu0 %v1183
  %v1260 = vpop.f32.mrb[0].mxu0
  %v1261 = vadd.f32 %v1181, %v1260
  %v1262 = vpop.f32.mrb[0].mxu0
  %1263 = vmatprep.mubr.f32.mxu0 0.0
  %1264 = vmatmul.mubr.f32.gmra.mrb[0].mxu0 %v1186
  %v1265 = vpop.f32.mrb[0].mxu0
  %v1266 = vadd.f32 %v1181, %v1265
  %v1267 = vpop.f32.mrb[0].mxu0
  %1268 = vmatprep.mubr.f32.mxu0 0.0
  %1269 = vmatmul.mubr.f32.gmra.mrb[0].mxu0 %v1189
  %v1270 = vpop.f32.mrb[0].mxu0
  %v1271 = vadd.f32 %v1181, %v1270
  %v1272 = vpop.f32.mrb[0].mxu0
  %1273 = vmatprep.mubr.f32.mxu0 0.0
  %1274 = vmatmul.mubr.f32.gmra.mrb[0].mxu0 %v1192
  %v1275 = vpop.f32.mrb[0].mxu0
  %v1276 = vadd.f32 %v1181, %v1275
  %v1277 = vpop.f32.mrb[0].mxu0
  %1278 = vdwg.mxu0
  %v1279 = vadd.f32 %v1161, %v1261
  %v1280 = vadd.f32 %v1162, %v1266
  %v1281 = vadd.f32 %v1163, %v1271
  %v1282 = vadd.f32 %v1164, %v1276
  %vm1283 = vcmp.gt.f32.partialorder %v1279, 0.0
  %vm1284 = vcmp.gt.f32.partialorder %v1280, 0.0
  %vm1285 = vcmp.gt.f32.partialorder %v1281, 0.0
  %vm1286 = vcmp.gt.f32.partialorder %v1282, 0.0
  %v1287 = vmul.f32 %v1279, 0.1
  %v1288 = vmul.f32 %v1280, 0.1
  %v1289 = vmul.f32 %v1281, 0.1
  %v1290 = vmul.f32 %v1282, 0.1
  %v1291 = vsel %vm1283, %v1279, %v1287
  %v1292 = vsel %vm1284, %v1280, %v1288
  %v1293 = vsel %vm1285, %v1281, %v1289
  %v1294 = vsel %vm1286, %v1282, %v1290
  %1295 = vst [vmem:[%s5] sm:$0xff] %v1291
  %1296 = vst [vmem:[%s5 + $0x8] sm:$0xff] %v1292
  %1297 = vst [vmem:[%s5 + $0x10] sm:$0xff] %v1293
  %1298 = vst [vmem:[%s5 + $0x18] sm:$0xff] %v1294
  // Predicated region
  $region22: #{resblock_pallas.1} parent=0 // pred_check
    _
  $region23: #{resblock_pallas.1} parent=0 // pred_check_branch
    %1300 = sbr.rel (0) target = $region25
  $region24: #{resblock_pallas.1} parent=0 // pred_region
    _
  $region25: #{resblock_pallas.1} parent=0 // pred_fallthru
    _
  // Predicated region
  $region26: #{resblock_pallas.1} parent=0 // pred_check
    _
  $region27: #{resblock_pallas.1} parent=0 // pred_check_branch
    %1302 = sbr.rel (0) target = $region29
  $region28: #{resblock_pallas.1} parent=0 // pred_region
    _
  $region29: #{resblock_pallas.1} parent=0 // pred_fallthru
    _

</llo_original>
